<compile_context>
chip_gen: v7x
topology: tpu7x:2x2x1
jax: 0.10.0
libtpu: 0.0.40
codegen_flags: <defaults>
</compile_context>

<pallas_src>
import jax
import jax.numpy as jnp
from jax import lax
from jax.experimental import pallas as pl
from jax.experimental.pallas import tpu as pltpu

# Model hyper-parameters (net_CNN defaults).
KSIZE = 2
IN_DIM = 5                       # spatial size of the 5x5 input
C_IN = 2                         # conv1 input channels
NK1 = 12                         # conv1 output channels
NK2 = 24                         # conv2 output channels
FC1_DIM = 100
FC2_DIM = 40
OUT_DIM = 1
D1 = IN_DIM - (KSIZE - 1)        # 4   conv1 output spatial
D2 = D1 - (KSIZE - 1)            # 3   conv2 output spatial
IN_FLAT = C_IN * IN_DIM * IN_DIM # 50  flattened NCHW input
H1_FLAT = NK1 * D1 * D1          # 192 flattened conv1 output
H2_FLAT = NK2 * D2 * D2          # 216 flattened conv2 output (fc1 features)
BN_EPS = 1e-5
TILE_B = 1024                    # max batch tile on the lane axis (sweep 1024-2048)


def net_cnn_kernel(x_ref, g_ref,
                   w1_ref, t1_ref,
                   w2_ref, t2_ref,
                   wf1_ref, wg1_ref, b1_ref,
                   wf2_ref, b2_ref,
                   wf3_ref, b3_ref,
                   out_ref):
    # x tile arrives batch-major (TB, 50); cast once to bf16 for the MXU and
    # contract its last dim so the batch lands on the lane axis of h1.
    xb = x_ref[...].astype(jnp.bfloat16)                                # (TB, 50)

    # conv1 + bn1 (+ conv bias) folded into W1d/t1, relu.  A . xT as one GEMM.
    h = lax.dot_general(w1_ref[...], xb,
                        dimension_numbers=(((1,), (1,)), ((), ())),
                        preferred_element_type=jnp.float32)             # (192, TB)
    h = jnp.maximum(h + t1_ref[...], 0.0).astype(jnp.bfloat16)

    # conv2 + bn2 folded into W2d/t2, relu.
    h = jnp.dot(w2_ref[...], h, preferred_element_type=jnp.float32)     # (216, TB)
    h = jnp.maximum(h + t2_ref[...], 0.0).astype(jnp.bfloat16)

    # fc1 (+ appended goal column) + relu.
    z = jnp.dot(wf1_ref[...], h, preferred_element_type=jnp.float32)    # (100, TB)
    z = jnp.maximum(z + wg1_ref[...] * g_ref[...] + b1_ref[...], 0.0
                    ).astype(jnp.bfloat16)

    # fc2 + relu.
    z = jnp.dot(wf2_ref[...], z, preferred_element_type=jnp.float32)    # (40, TB)
    z = jnp.maximum(z + b2_ref[...], 0.0).astype(jnp.bfloat16)

    # fc3 -> lane-dense (1, TB) store.
    out_ref[...] = (jnp.dot(wf3_ref[...], z, preferred_element_type=jnp.float32)
                    + b3_ref[...])


def _round_up(n, m):
    return ((n + m - 1) // m) * m


def _pick_tile_b(batch, max_tile=TILE_B):
    """Lane-aligned (multiple of 128) batch tile, capped at max_tile.
    Prefers >= 2 grid steps when the batch allows it (v7x megacore)."""
    tile = min(max_tile, _round_up(max(batch, 1), 128))
    if batch > 2 * 128 and pl.cdiv(batch, tile) < 2:
        tile = _round_up(pl.cdiv(batch, 2), 128)
    return max(tile, 128)


def net_cnn_forward(x, g, params, max_tile_b=TILE_B):
    """x: (B, 2, 5, 5) NCHW float32, g: (B, 1) float32 -> (B, 1) float32."""
    B = x.shape[0]
    tile_b = _pick_tile_b(B, max_tile_b)
    n_tiles = pl.cdiv(B, tile_b)

    # Glue is free reshapes only (row-major bitcasts): no transpose, no pad.
    x2d = x.reshape(B, IN_FLAT).astype(jnp.float32)        # (B, 50) batch-major
    g2d = g.reshape(1, B).astype(jnp.float32)              # (1, B)  batch on lanes

    def full_spec(arr):
        nd = arr.ndim
        return pl.BlockSpec(arr.shape, lambda t, _n=nd: (0,) * _n)

    out = pl.pallas_call(
        net_cnn_kernel,
        out_shape=jax.ShapeDtypeStruct((1, B), jnp.float32),
        grid=(n_tiles,),
        in_specs=[pl.BlockSpec((tile_b, IN_FLAT), lambda t: (t, 0)),  # x  (TB, 50)
                  pl.BlockSpec((1, tile_b), lambda t: (0, t))]        # g  (1, TB)
                 + [full_spec(w) for w in params],
        out_specs=pl.BlockSpec((1, tile_b), lambda t: (0, t)),
        compiler_params=pltpu.CompilerParams(
            dimension_semantics=("parallel",)),
    )(x2d, g2d, *params)
    return out.reshape(B, OUT_DIM)


# ----------------------------------------------------------------------------
# Deterministic parameter init (PyTorch layouts), dense-lowering repack, and a
# pure-JAX reference used for a sanity check.
# ----------------------------------------------------------------------------
def init_raw_params(key):
    ks = jax.random.split(key, 20)

    def u(k, shape, fan_in):
        bound = float(fan_in) ** -0.5
        return jax.random.uniform(k, shape, jnp.float32, -bound, bound)

    w1 = u(ks[0], (NK1, C_IN, KSIZE, KSIZE), C_IN * KSIZE * KSIZE)
    bc1 = u(ks[1], (NK1,), C_IN * KSIZE * KSIZE)
    ga1 = 1.0 + 0.1 * jax.random.normal(ks[2], (NK1,), jnp.float32)
    be1 = 0.1 * jax.random.normal(ks[3], (NK1,), jnp.float32)
    rm1 = 0.1 * jax.random.normal(ks[4], (NK1,), jnp.float32)
    rv1 = jax.random.uniform(ks[5], (NK1,), jnp.float32, 0.5, 1.5)

    w2 = u(ks[6], (NK2, NK1, KSIZE, KSIZE), NK1 * KSIZE * KSIZE)
    bc2 = u(ks[7], (NK2,), NK1 * KSIZE * KSIZE)
    ga2 = 1.0 + 0.1 * jax.random.normal(ks[8], (NK2,), jnp.float32)
    be2 = 0.1 * jax.random.normal(ks[9], (NK2,), jnp.float32)
    rm2 = 0.1 * jax.random.normal(ks[10], (NK2,), jnp.float32)
    rv2 = jax.random.uniform(ks[11], (NK2,), jnp.float32, 0.5, 1.5)

    wf1 = u(ks[12], (FC1_DIM, H2_FLAT + 1), H2_FLAT + 1)
    bf1 = u(ks[13], (FC1_DIM,), H2_FLAT + 1)
    wf2 = u(ks[14], (FC2_DIM, FC1_DIM), FC1_DIM)
    bf2 = u(ks[15], (FC2_DIM,), FC1_DIM)
    wf3 = u(ks[16], (OUT_DIM, FC2_DIM), FC2_DIM)
    bf3 = u(ks[17], (OUT_DIM,), FC2_DIM)
    return (w1, bc1, ga1, be1, rm1, rv1, w2, bc2, ga2, be2, rm2, rv2,
            wf1, bf1, wf2, bf2, wf3, bf3)


def _dense_conv_matrix(w, in_shape):
    """Dense lowering: M (out_flat, in_flat) with M @ flat(x) == flat(conv(x)),
    flattening both sides in NCHW (channel-major) order."""
    n_in = in_shape[0] * in_shape[1] * in_shape[2]
    eye = jnp.eye(n_in, dtype=jnp.float32).reshape((n_in,) + in_shape)
    y = jax.lax.conv_general_dilated(
        eye, w, window_strides=(1, 1), padding="VALID",
        dimension_numbers=("NCHW", "OIHW", "NCHW"))
    return y.reshape(n_in, -1).T                     # (out_flat, in_flat)


def repack_params(raw):
    (w1, bc1, ga1, be1, rm1, rv1, w2, bc2, ga2, be2, rm2, rv2,
     wf1, bf1, wf2, bf2, wf3, bf3) = raw

    # Dense-lowered conv matrices (NCHW-flatten ordering on both sides).
    w1d = _dense_conv_matrix(w1, (C_IN, IN_DIM, IN_DIM))   # (192, 50)
    w2d = _dense_conv_matrix(w2, (NK1, D1, D1))            # (216, 192)

    # Fold conv bias + BatchNorm (running stats) into per-feature scale/shift,
    # then fold the SCALE straight into the dense conv matrices (zero VPU cost
    # in-kernel); only the per-row shift survives as a broadcast add.
    s1 = ga1 / jnp.sqrt(rv1 + BN_EPS)
    t1 = (bc1 - rm1) * s1 + be1
    s2 = ga2 / jnp.sqrt(rv2 + BN_EPS)
    t2 = (bc2 - rm2) * s2 + be2
    w1d = w1d * jnp.repeat(s1, D1 * D1)[:, None]
    w2d = w2d * jnp.repeat(s2, D2 * D2)[:, None]
    t1_col = jnp.repeat(t1, D1 * D1).reshape(H1_FLAT, 1).astype(jnp.float32)
    t2_col = jnp.repeat(t2, D2 * D2).reshape(H2_FLAT, 1).astype(jnp.float32)

    wf1_main = wf1[:, :H2_FLAT]                            # (100, 216)
    wg1_col = wf1[:, H2_FLAT:].astype(jnp.float32)         # (100, 1) goal column
    b1_col = bf1.reshape(FC1_DIM, 1).astype(jnp.float32)
    b2_col = bf2.reshape(FC2_DIM, 1).astype(jnp.float32)
    b3_col = bf3.reshape(OUT_DIM, 1).astype(jnp.float32)

    bf16 = jnp.bfloat16
    return (w1d.astype(bf16), t1_col,
            w2d.astype(bf16), t2_col,
            wf1_main.astype(bf16), wg1_col, b1_col,
            wf2.astype(bf16), b2_col,
            wf3.astype(bf16), b3_col)


def reference_forward(x, g, raw):
    (w1, bc1, ga1, be1, rm1, rv1, w2, bc2, ga2, be2, rm2, rv2,
     wf1, bf1, wf2, bf2, wf3, bf3) = raw

    def conv(h, w, b):
        y = jax.lax.conv_general_dilated(
            h, w, window_strides=(1, 1), padding="VALID",
            dimension_numbers=("NCHW", "OIHW", "NCHW"))
        return y + b[None, :, None, None]

    def bn(h, ga, be, rm, rv):
        return ((h - rm[None, :, None, None]) /
                jnp.sqrt(rv[None, :, None, None] + BN_EPS)
                * ga[None, :, None, None] + be[None, :, None, None])

    h = jax.nn.relu(bn(conv(x, w1, bc1), ga1, be1, rm1, rv1))
    h = jax.nn.relu(bn(conv(h, w2, bc2), ga2, be2, rm2, rv2))
    h = h.reshape(x.shape[0], -1)                     # NCHW channel-major flatten
    h = jnp.concatenate([h, g], axis=1)               # append_goal
    h = jax.nn.relu(h @ wf1.T + bf1)
    h = jax.nn.relu(h @ wf2.T + bf2)
    return h @ wf3.T + bf3


if __name__ == "__main__":
    key = jax.random.PRNGKey(0)
    kx, kg, kp = jax.random.split(key, 3)
    B = 2
    x = jax.random.normal(kx, (B, C_IN, IN_DIM, IN_DIM), jnp.float32)
    g = jax.random.normal(kg, (B, 1), jnp.float32)

    raw = init_raw_params(kp)
    params = repack_params(raw)

    out = net_cnn_forward(x, g, params)
    out = jax.block_until_ready(out)
    assert out.shape == (B, OUT_DIM)

    ref = reference_forward(x, g, raw)
    # Lenient tolerance: bf16 MXU operands (matches TPU default f32 dot class).
    if not jnp.allclose(out, ref, atol=1e-2, rtol=1e-2):
        raise AssertionError(f"mismatch: kernel={out}, ref={ref}")
    print("KERNEL_OK")
</pallas_src>

<mosaic_0001>
module attributes {stable_mosaic.version = 11 : i64} {
  func.func @net_cnn_kernel(%arg0: i32, %arg1: memref<128x50xf32, #tpu.memory_space<vmem>>, %arg2: memref<1x128xf32, #tpu.memory_space<vmem>>, %arg3: memref<192x50xbf16, #tpu.memory_space<vmem>>, %arg4: memref<192x1xf32, #tpu.memory_space<vmem>>, %arg5: memref<216x192xbf16, #tpu.memory_space<vmem>>, %arg6: memref<216x1xf32, #tpu.memory_space<vmem>>, %arg7: memref<100x216xbf16, #tpu.memory_space<vmem>>, %arg8: memref<100x1xf32, #tpu.memory_space<vmem>>, %arg9: memref<100x1xf32, #tpu.memory_space<vmem>>, %arg10: memref<40x100xbf16, #tpu.memory_space<vmem>>, %arg11: memref<40x1xf32, #tpu.memory_space<vmem>>, %arg12: memref<1x40xbf16, #tpu.memory_space<vmem>>, %arg13: memref<1x1xf32, #tpu.memory_space<vmem>>, %arg14: memref<1x128xf32, #tpu.memory_space<vmem>>) attributes {dimension_semantics = [#tpu.dimension_semantics<parallel>], iteration_bounds = array<i64: 1>, scalar_prefetch = 0 : i64, scratch_operands = 0 : i64, tpu.core_type = #tpu.core_type<tc>, window_params = [{transform_indices = @transform_0, window_bounds = array<i64: 128, 50>}, {transform_indices = @transform_1, window_bounds = array<i64: 1, 128>}, {pipeline_mode = #tpu.pipeline_mode<synchronous>, transform_indices = @transform_2, window_bounds = array<i64: 192, 50>}, {pipeline_mode = #tpu.pipeline_mode<synchronous>, transform_indices = @transform_3, window_bounds = array<i64: 192, 1>}, {pipeline_mode = #tpu.pipeline_mode<synchronous>, transform_indices = @transform_4, window_bounds = array<i64: 216, 192>}, {pipeline_mode = #tpu.pipeline_mode<synchronous>, transform_indices = @transform_5, window_bounds = array<i64: 216, 1>}, {pipeline_mode = #tpu.pipeline_mode<synchronous>, transform_indices = @transform_6, window_bounds = array<i64: 100, 216>}, {pipeline_mode = #tpu.pipeline_mode<synchronous>, transform_indices = @transform_7, window_bounds = array<i64: 100, 1>}, {pipeline_mode = #tpu.pipeline_mode<synchronous>, transform_indices = @transform_8, window_bounds = array<i64: 100, 1>}, {pipeline_mode = #tpu.pipeline_mode<synchronous>, transform_indices = @transform_9, window_bounds = array<i64: 40, 100>}, {pipeline_mode = #tpu.pipeline_mode<synchronous>, transform_indices = @transform_10, window_bounds = array<i64: 40, 1>}, {pipeline_mode = #tpu.pipeline_mode<synchronous>, transform_indices = @transform_11, window_bounds = array<i64: 1, 40>}, {pipeline_mode = #tpu.pipeline_mode<synchronous>, transform_indices = @transform_12, window_bounds = array<i64: 1, 1>}, {transform_indices = @transform_13, window_bounds = array<i64: 1, 128>}]} {
    %c0 = arith.constant 0 : index
    %c0_0 = arith.constant 0 : index
    %0 = vector.load %arg1[%c0, %c0_0] : memref<128x50xf32, #tpu.memory_space<vmem>>, vector<128x50xf32>
    %1 = arith.truncf %0 : vector<128x50xf32> to vector<128x50xbf16>
    %c0_1 = arith.constant 0 : index
    %c0_2 = arith.constant 0 : index
    %2 = vector.load %arg3[%c0_1, %c0_2] : memref<192x50xbf16, #tpu.memory_space<vmem>>, vector<192x50xbf16>
    %cst = arith.constant dense<0.000000e+00> : vector<192x128xf32>
    %3 = tpu.matmul %2, %1, %cst {dimension_numbers = #tpu.dot_dimension_numbers<[1], [1], [0], [0], [0, 0, 1, 0], [], []>} : vector<192x50xbf16>, vector<128x50xbf16>, vector<192x128xf32> -> vector<192x128xf32>
    %c0_3 = arith.constant 0 : index
    %c0_4 = arith.constant 0 : index
    %4 = vector.load %arg4[%c0_3, %c0_4] : memref<192x1xf32, #tpu.memory_space<vmem>>, vector<192x1xf32>
    %5 = vector.broadcast %4 : vector<192x1xf32> to vector<192x128xf32>
    %6 = arith.addf %3, %5 : vector<192x128xf32>
    %cst_5 = arith.constant 0.000000e+00 : f32
    %7 = vector.broadcast %cst_5 : f32 to vector<192x128xf32>
    %8 = arith.maximumf %6, %7 : vector<192x128xf32>
    %9 = arith.truncf %8 : vector<192x128xf32> to vector<192x128xbf16>
    %c0_6 = arith.constant 0 : index
    %c0_7 = arith.constant 0 : index
    %10 = vector.load %arg5[%c0_6, %c0_7] : memref<216x192xbf16, #tpu.memory_space<vmem>>, vector<216x192xbf16>
    %cst_8 = arith.constant dense<0.000000e+00> : vector<216x128xf32>
    %11 = tpu.matmul %10, %9, %cst_8 {dimension_numbers = #tpu.dot_dimension_numbers<[1], [0], [0], [1], [0, 0, 1, 1], [], []>} : vector<216x192xbf16>, vector<192x128xbf16>, vector<216x128xf32> -> vector<216x128xf32>
    %c0_9 = arith.constant 0 : index
    %c0_10 = arith.constant 0 : index
    %12 = vector.load %arg6[%c0_9, %c0_10] : memref<216x1xf32, #tpu.memory_space<vmem>>, vector<216x1xf32>
    %13 = vector.broadcast %12 : vector<216x1xf32> to vector<216x128xf32>
    %14 = arith.addf %11, %13 : vector<216x128xf32>
    %cst_11 = arith.constant 0.000000e+00 : f32
    %15 = vector.broadcast %cst_11 : f32 to vector<216x128xf32>
    %16 = arith.maximumf %14, %15 : vector<216x128xf32>
    %17 = arith.truncf %16 : vector<216x128xf32> to vector<216x128xbf16>
    %c0_12 = arith.constant 0 : index
    %c0_13 = arith.constant 0 : index
    %18 = vector.load %arg7[%c0_12, %c0_13] : memref<100x216xbf16, #tpu.memory_space<vmem>>, vector<100x216xbf16>
    %cst_14 = arith.constant dense<0.000000e+00> : vector<100x128xf32>
    %19 = tpu.matmul %18, %17, %cst_14 {dimension_numbers = #tpu.dot_dimension_numbers<[1], [0], [0], [1], [0, 0, 1, 1], [], []>} : vector<100x216xbf16>, vector<216x128xbf16>, vector<100x128xf32> -> vector<100x128xf32>
    %c0_15 = arith.constant 0 : index
    %c0_16 = arith.constant 0 : index
    %20 = vector.load %arg8[%c0_15, %c0_16] : memref<100x1xf32, #tpu.memory_space<vmem>>, vector<100x1xf32>
    %c0_17 = arith.constant 0 : index
    %c0_18 = arith.constant 0 : index
    %21 = vector.load %arg2[%c0_17, %c0_18] : memref<1x128xf32, #tpu.memory_space<vmem>>, vector<1x128xf32>
    %22 = vector.broadcast %20 : vector<100x1xf32> to vector<100x128xf32>
    %23 = vector.broadcast %21 : vector<1x128xf32> to vector<100x128xf32>
    %24 = arith.mulf %22, %23 : vector<100x128xf32>
    %25 = arith.addf %19, %24 : vector<100x128xf32>
    %c0_19 = arith.constant 0 : index
    %c0_20 = arith.constant 0 : index
    %26 = vector.load %arg9[%c0_19, %c0_20] : memref<100x1xf32, #tpu.memory_space<vmem>>, vector<100x1xf32>
    %27 = vector.broadcast %26 : vector<100x1xf32> to vector<100x128xf32>
    %28 = arith.addf %25, %27 : vector<100x128xf32>
    %cst_21 = arith.constant 0.000000e+00 : f32
    %29 = vector.broadcast %cst_21 : f32 to vector<100x128xf32>
    %30 = arith.maximumf %28, %29 : vector<100x128xf32>
    %31 = arith.truncf %30 : vector<100x128xf32> to vector<100x128xbf16>
    %c0_22 = arith.constant 0 : index
    %c0_23 = arith.constant 0 : index
    %32 = vector.load %arg10[%c0_22, %c0_23] : memref<40x100xbf16, #tpu.memory_space<vmem>>, vector<40x100xbf16>
    %cst_24 = arith.constant dense<0.000000e+00> : vector<40x128xf32>
    %33 = tpu.matmul %32, %31, %cst_24 {dimension_numbers = #tpu.dot_dimension_numbers<[1], [0], [0], [1], [0, 0, 1, 1], [], []>} : vector<40x100xbf16>, vector<100x128xbf16>, vector<40x128xf32> -> vector<40x128xf32>
    %c0_25 = arith.constant 0 : index
    %c0_26 = arith.constant 0 : index
    %34 = vector.load %arg11[%c0_25, %c0_26] : memref<40x1xf32, #tpu.memory_space<vmem>>, vector<40x1xf32>
    %35 = vector.broadcast %34 : vector<40x1xf32> to vector<40x128xf32>
    %36 = arith.addf %33, %35 : vector<40x128xf32>
    %cst_27 = arith.constant 0.000000e+00 : f32
    %37 = vector.broadcast %cst_27 : f32 to vector<40x128xf32>
    %38 = arith.maximumf %36, %37 : vector<40x128xf32>
    %39 = arith.truncf %38 : vector<40x128xf32> to vector<40x128xbf16>
    %c0_28 = arith.constant 0 : index
    %c0_29 = arith.constant 0 : index
    %40 = vector.load %arg12[%c0_28, %c0_29] : memref<1x40xbf16, #tpu.memory_space<vmem>>, vector<1x40xbf16>
    %cst_30 = arith.constant dense<0.000000e+00> : vector<1x128xf32>
    %41 = tpu.matmul %40, %39, %cst_30 {dimension_numbers = #tpu.dot_dimension_numbers<[1], [0], [0], [1], [0, 0, 1, 1], [], []>} : vector<1x40xbf16>, vector<40x128xbf16>, vector<1x128xf32> -> vector<1x128xf32>
    %c0_31 = arith.constant 0 : index
    %c0_32 = arith.constant 0 : index
    %42 = vector.load %arg13[%c0_31, %c0_32] : memref<1x1xf32, #tpu.memory_space<vmem>>, vector<1x1xf32>
    %43 = vector.broadcast %42 : vector<1x1xf32> to vector<1x128xf32>
    %44 = arith.addf %41, %43 : vector<1x128xf32>
    %c0_33 = arith.constant 0 : index
    %c0_34 = arith.constant 0 : index
    %45 = vector.load %arg14[%c0_33, %c0_34] : memref<1x128xf32, #tpu.memory_space<vmem>>, vector<1x128xf32>
    tpu.vector_store %arg14[%c0_33, %c0_34], %44 {strides = array<i32>} : memref<1x128xf32, #tpu.memory_space<vmem>>, vector<1x128xf32>,
    return
  }
  func.func @transform_0(%arg0: i32) -> (i32, i32) {
    %c0_i32 = arith.constant 0 : i32
    %c0_i32_0 = arith.constant 0 : i32
    return %arg0, %c0_i32 : i32, i32
  }
  func.func @transform_1(%arg0: i32) -> (i32, i32) {
    %c0_i32 = arith.constant 0 : i32
    %c0_i32_0 = arith.constant 0 : i32
    return %c0_i32, %arg0 : i32, i32
  }
  func.func @transform_2(%arg0: i32) -> (i32, i32) {
    %c0_i32 = arith.constant 0 : i32
    %c0_i32_0 = arith.constant 0 : i32
    %c0_i32_1 = arith.constant 0 : i32
    return %c0_i32, %c0_i32_0 : i32, i32
  }
  func.func @transform_3(%arg0: i32) -> (i32, i32) {
    %c0_i32 = arith.constant 0 : i32
    %c0_i32_0 = arith.constant 0 : i32
    %c0_i32_1 = arith.constant 0 : i32
    return %c0_i32, %c0_i32_0 : i32, i32
  }
  func.func @transform_4(%arg0: i32) -> (i32, i32) {
    %c0_i32 = arith.constant 0 : i32
    %c0_i32_0 = arith.constant 0 : i32
    %c0_i32_1 = arith.constant 0 : i32
    return %c0_i32, %c0_i32_0 : i32, i32
  }
  func.func @transform_5(%arg0: i32) -> (i32, i32) {
    %c0_i32 = arith.constant 0 : i32
    %c0_i32_0 = arith.constant 0 : i32
    %c0_i32_1 = arith.constant 0 : i32
    return %c0_i32, %c0_i32_0 : i32, i32
  }
  func.func @transform_6(%arg0: i32) -> (i32, i32) {
    %c0_i32 = arith.constant 0 : i32
    %c0_i32_0 = arith.constant 0 : i32
    %c0_i32_1 = arith.constant 0 : i32
    return %c0_i32, %c0_i32_0 : i32, i32
  }
  func.func @transform_7(%arg0: i32) -> (i32, i32) {
    %c0_i32 = arith.constant 0 : i32
    %c0_i32_0 = arith.constant 0 : i32
    %c0_i32_1 = arith.constant 0 : i32
    return %c0_i32, %c0_i32_0 : i32, i32
  }
  func.func @transform_8(%arg0: i32) -> (i32, i32) {
    %c0_i32 = arith.constant 0 : i32
    %c0_i32_0 = arith.constant 0 : i32
    %c0_i32_1 = arith.constant 0 : i32
    return %c0_i32, %c0_i32_0 : i32, i32
  }
  func.func @transform_9(%arg0: i32) -> (i32, i32) {
    %c0_i32 = arith.constant 0 : i32
    %c0_i32_0 = arith.constant 0 : i32
    %c0_i32_1 = arith.constant 0 : i32
    return %c0_i32, %c0_i32_0 : i32, i32
  }
  func.func @transform_10(%arg0: i32) -> (i32, i32) {
    %c0_i32 = arith.constant 0 : i32
    %c0_i32_0 = arith.constant 0 : i32
    %c0_i32_1 = arith.constant 0 : i32
    return %c0_i32, %c0_i32_0 : i32, i32
  }
  func.func @transform_11(%arg0: i32) -> (i32, i32) {
    %c0_i32 = arith.constant 0 : i32
    %c0_i32_0 = arith.constant 0 : i32
    %c0_i32_1 = arith.constant 0 : i32
    return %c0_i32, %c0_i32_0 : i32, i32
  }
  func.func @transform_12(%arg0: i32) -> (i32, i32) {
    %c0_i32 = arith.constant 0 : i32
    %c0_i32_0 = arith.constant 0 : i32
    %c0_i32_1 = arith.constant 0 : i32
    return %c0_i32, %c0_i32_0 : i32, i32
  }
  func.func @transform_13(%arg0: i32) -> (i32, i32) {
    %c0_i32 = arith.constant 0 : i32
    %c0_i32_0 = arith.constant 0 : i32
    return %c0_i32, %arg0 : i32, i32
  }
}

</mosaic_0001>

<llo_original>
// kernel: tpu_custom_call.1
$region0: #{tpu_custom_call.1}
  #allocation0 [shape = 'u32[]', space=smem, size = 0x4, offset = 0x4, fixed_abs, tag = 'smem constant byte address 0x4 - core index']
  #allocation1 [shape = 'u32[144,128]{1,0:T(1,128)}', space=vmem, size = 0x12000, scoped, tag = 'internal scratch']
  #allocation2 [shape = 'f32[1,1]{1,0:T(1,128)S(1)}', space=vmem, size = 0x200, scoped, tag = 'scoped memory for tpu_custom_call.1']
  %s0 = inlined_call_operand.vmem [shape: f32[2,50], index: 0, kind: input, shape index: {}]
  %s1 = inlined_call_operand.vmem [shape: f32[1,2], index: 1, kind: input, shape index: {}]
  %s2 = inlined_call_operand.vmem [shape: bf16[192,50], index: 2, kind: input, shape index: {}]
  %s3 = inlined_call_operand.vmem [shape: f32[192,1], index: 3, kind: input, shape index: {}]
  %s4 = inlined_call_operand.vmem [shape: bf16[216,192], index: 4, kind: input, shape index: {}]
  %s5 = inlined_call_operand.vmem [shape: f32[216,1], index: 5, kind: input, shape index: {}]
  %s6 = inlined_call_operand.vmem [shape: bf16[100,216], index: 6, kind: input, shape index: {}]
  %s7 = inlined_call_operand.vmem [shape: f32[100,1], index: 7, kind: input, shape index: {}]
  %s8 = inlined_call_operand.vmem [shape: f32[100,1], index: 8, kind: input, shape index: {}]
  %s9 = inlined_call_operand.vmem [shape: bf16[40,100], index: 9, kind: input, shape index: {}]
  %s10 = inlined_call_operand.vmem [shape: f32[40,1], index: 10, kind: input, shape index: {}]
  %s11 = inlined_call_operand.vmem [shape: bf16[1,40], index: 11, kind: input, shape index: {}]
  %s12 = inlined_call_operand.<no memory space> [shape: f32[1,1], index: 12, kind: input, shape index: {}]
  %s13 = inlined_call_operand.hbm [shape: f32[1,2], index: 13, kind: output, shape index: {}]
  %s14 = sld [smem:[#allocation0]]
  $region62: #{tpu_custom_call.1} parent=0
    _
  %s16 = ssub.s32 1, %s14
  %s17 = scalar_select 0, %s16, %s14
  %v18 = vstv %s12
  %19 = vst [vmem:[#allocation2] sm:$0x1] %v18
  $region1: #{tpu_custom_call.1} parent=0
    #allocation3 [shape = 'u8[512]{0}', space=vmem, size = 0x400, scoped, tag = 'output window, operand 0, single buffered']
    #allocation4 [shape = 's32[1]{0}', space=sflag, size = 0x4, scoped, tag = 'scoped memory for tpu_custom_call.1']
    %20 = vsyncpa [#allocation4], 0
    // Predicated region
    $region2: #{tpu_custom_call.1} parent=1 // pred_check
      _
    $region3: #{tpu_custom_call.1} parent=1 // pred_check_branch
      %22 = sbr.rel (0) target = $region5
    $region4: #{tpu_custom_call.1} parent=1 // pred_region
      _
    $region5: #{tpu_custom_call.1} parent=1 // pred_fallthru
      _
    // Predicated region
    $region6: #{tpu_custom_call.1} parent=1 // pred_check
      _
    $region7: #{tpu_custom_call.1} parent=1 // pred_check_branch
      %24 = sbr.rel (0) target = $region9
    $region8: #{tpu_custom_call.1} parent=1 // pred_region
      _
    $region9: #{tpu_custom_call.1} parent=1 // pred_fallthru
      _
    // Predicated region
    $region10: #{tpu_custom_call.1} parent=1 // pred_check
      _
    $region11: #{tpu_custom_call.1} parent=1 // pred_check_branch
      %26 = sbr.rel (0) target = $region13
    $region12: #{tpu_custom_call.1} parent=1 // pred_region
      _
    $region13: #{tpu_custom_call.1} parent=1 // pred_fallthru
      _
    // Predicated region
    $region14: #{tpu_custom_call.1} parent=1 // pred_check
      _
    $region15: #{tpu_custom_call.1} parent=1 // pred_check_branch
      %28 = sbr.rel (0) target = $region17
    $region16: #{tpu_custom_call.1} parent=1 // pred_region
      _
    $region17: #{tpu_custom_call.1} parent=1 // pred_fallthru
      _
    // Predicated region
    $region18: #{tpu_custom_call.1} parent=1 // pred_check
      _
    $region19: #{tpu_custom_call.1} parent=1 // pred_check_branch
      %30 = sbr.rel (0) target = $region21
    $region20: #{tpu_custom_call.1} parent=1 // pred_region
      _
    $region21: #{tpu_custom_call.1} parent=1 // pred_fallthru
      _
    // Predicated region
    $region22: #{tpu_custom_call.1} parent=1 // pred_check
      _
    $region23: #{tpu_custom_call.1} parent=1 // pred_check_branch
      %32 = sbr.rel (0) target = $region25
    $region24: #{tpu_custom_call.1} parent=1 // pred_region
      _
    $region25: #{tpu_custom_call.1} parent=1 // pred_fallthru
      _
    // Predicated region
    $region26: #{tpu_custom_call.1} parent=1 // pred_check
      _
    $region27: #{tpu_custom_call.1} parent=1 // pred_check_branch
      %34 = sbr.rel (0) target = $region29
    $region28: #{tpu_custom_call.1} parent=1 // pred_region
      _
    $region29: #{tpu_custom_call.1} parent=1 // pred_fallthru
      _
    // Predicated region
    $region30: #{tpu_custom_call.1} parent=1 // pred_check
      _
    $region31: #{tpu_custom_call.1} parent=1 // pred_check_branch
      %36 = sbr.rel (0) target = $region33
    $region32: #{tpu_custom_call.1} parent=1 // pred_region
      _
    $region33: #{tpu_custom_call.1} parent=1 // pred_fallthru
      _
    // Predicated region
    $region34: #{tpu_custom_call.1} parent=1 // pred_check
      _
    $region35: #{tpu_custom_call.1} parent=1 // pred_check_branch
      %38 = sbr.rel (0) target = $region37
    $region36: #{tpu_custom_call.1} parent=1 // pred_region
      _
    $region37: #{tpu_custom_call.1} parent=1 // pred_fallthru
      _
    // Predicated region
    $region38: #{tpu_custom_call.1} parent=1 // pred_check
      _
    $region39: #{tpu_custom_call.1} parent=1 // pred_check_branch
      %40 = sbr.rel (0) target = $region41
    $region40: #{tpu_custom_call.1} parent=1 // pred_region
      _
    $region41: #{tpu_custom_call.1} parent=1 // pred_fallthru
      _
    // Predicated region
    $region42: #{tpu_custom_call.1} parent=1 // pred_check
      _
    $region43: #{tpu_custom_call.1} parent=1 // pred_check_branch
      %42 = sbr.rel (0) target = $region45
    $region44: #{tpu_custom_call.1} parent=1 // pred_region
      _
    $region45: #{tpu_custom_call.1} parent=1 // pred_fallthru
      _
    // Predicated region
    $region46: #{tpu_custom_call.1} parent=1 // pred_check
      _
    $region47: #{tpu_custom_call.1} parent=1 // pred_check_branch
      %44 = sbr.rel (0) target = $region49
    $region48: #{tpu_custom_call.1} parent=1 // pred_region
      _
    $region49: #{tpu_custom_call.1} parent=1 // pred_fallthru
      _
    // Predicated region
    $region50: #{tpu_custom_call.1} parent=1 // pred_check
      _
    $region51: #{tpu_custom_call.1} parent=1 // pred_check_branch
      %46 = sbr.rel (0) target = $region53
    $region52: #{tpu_custom_call.1} parent=1 // pred_region
      _
    $region53: #{tpu_custom_call.1} parent=1 // pred_fallthru
      _
    %v48 = vld [vmem:[%s0] sm:$0xff]
    %v49 = vld [vmem:[%s0 + $0x8] sm:$0xff]
    %v50 = vld [vmem:[%s0 + $0x10] sm:$0xff]
    %v51 = vld [vmem:[%s0 + $0x18] sm:$0xff]
    %v52 = vld [vmem:[%s0 + $0x20] sm:$0xff]
    %v53 = vld [vmem:[%s0 + $0x28] sm:$0xff]
    %v54 = vld [vmem:[%s0 + $0x30] sm:$0xff]
    %v55 = vld [vmem:[%s0 + $0x38] sm:$0xff]
    %v56 = vld [vmem:[%s0 + $0x40] sm:$0xff]
    %v57 = vld [vmem:[%s0 + $0x48] sm:$0xff]
    %v58 = vld [vmem:[%s0 + $0x50] sm:$0xff]
    %v59 = vld [vmem:[%s0 + $0x58] sm:$0xff]
    %v60 = vld [vmem:[%s0 + $0x60] sm:$0xff]
    %v61 = vld [vmem:[%s0 + $0x68] sm:$0xff]
    %v62 = vld [vmem:[%s0 + $0x70] sm:$0xff]
    %v63 = vld [vmem:[%s0 + $0x78] sm:$0xff]
    %v64 = vpack.c.bf16 %v49, %v48
    %v65 = vpack.c.bf16 %v51, %v50
    %v66 = vpack.c.bf16 %v53, %v52
    %v67 = vpack.c.bf16 %v55, %v54
    %v68 = vpack.c.bf16 %v57, %v56
    %v69 = vpack.c.bf16 %v59, %v58
    %v70 = vpack.c.bf16 %v61, %v60
    %v71 = vpack.c.bf16 %v63, %v62
    %v72 = vld [vmem:[%s2] sm:$0xf]
    %v73 = vld [vmem:[%s2 + $0x4] sm:$0xf]
    %v74 = vld [vmem:[%s2 + $0x8] sm:$0xf]
    %v75 = vld [vmem:[%s2 + $0xc] sm:$0xf]
    %v76 = vld [vmem:[%s2 + $0x10] sm:$0xf]
    %v77 = vld [vmem:[%s2 + $0x14] sm:$0xf]
    %v78 = vld [vmem:[%s2 + $0x18] sm:$0xf]
    %v79 = vld [vmem:[%s2 + $0x1c] sm:$0xf]
    %v80 = vld [vmem:[%s2 + $0x20] sm:$0xf]
    %v81 = vld [vmem:[%s2 + $0x24] sm:$0xf]
    %v82 = vld [vmem:[%s2 + $0x28] sm:$0xf]
    %v83 = vld [vmem:[%s2 + $0x2c] sm:$0xf]
    %v84 = vld [vmem:[%s2 + $0x30] sm:$0xf]
    %v85 = vld [vmem:[%s2 + $0x34] sm:$0xf]
    %v86 = vld [vmem:[%s2 + $0x38] sm:$0xf]
    %v87 = vld [vmem:[%s2 + $0x3c] sm:$0xf]
    %v88 = vld [vmem:[%s2 + $0x40] sm:$0xf]
    %v89 = vld [vmem:[%s2 + $0x44] sm:$0xf]
    %v90 = vld [vmem:[%s2 + $0x48] sm:$0xf]
    %v91 = vld [vmem:[%s2 + $0x4c] sm:$0xf]
    %v92 = vld [vmem:[%s2 + $0x50] sm:$0xf]
    %v93 = vld [vmem:[%s2 + $0x54] sm:$0xf]
    %v94 = vld [vmem:[%s2 + $0x58] sm:$0xf]
    %v95 = vld [vmem:[%s2 + $0x5c] sm:$0xf]
    %v96 = vld [vmem:[%s3] sm:$0xff]
    %v97 = vld [vmem:[%s3 + $0x8] sm:$0xff]
    %v98 = vld [vmem:[%s3 + $0x10] sm:$0xff]
    %v99 = vld [vmem:[%s3 + $0x18] sm:$0xff]
    %v100 = vld [vmem:[%s3 + $0x20] sm:$0xff]
    %v101 = vld [vmem:[%s3 + $0x28] sm:$0xff]
    %v102 = vld [vmem:[%s3 + $0x30] sm:$0xff]
    %v103 = vld [vmem:[%s3 + $0x38] sm:$0xff]
    %v104 = vld [vmem:[%s3 + $0x40] sm:$0xff]
    %v105 = vld [vmem:[%s3 + $0x48] sm:$0xff]
    %v106 = vld [vmem:[%s3 + $0x50] sm:$0xff]
    %v107 = vld [vmem:[%s3 + $0x58] sm:$0xff]
    %v108 = vld [vmem:[%s3 + $0x60] sm:$0xff]
    %v109 = vld [vmem:[%s3 + $0x68] sm:$0xff]
    %v110 = vld [vmem:[%s3 + $0x70] sm:$0xff]
    %v111 = vld [vmem:[%s3 + $0x78] sm:$0xff]
    %v112 = vld [vmem:[%s3 + $0x80] sm:$0xff]
    %v113 = vld [vmem:[%s3 + $0x88] sm:$0xff]
    %v114 = vld [vmem:[%s3 + $0x90] sm:$0xff]
    %v115 = vld [vmem:[%s3 + $0x98] sm:$0xff]
    %v116 = vld [vmem:[%s3 + $0xa0] sm:$0xff]
    %v117 = vld [vmem:[%s3 + $0xa8] sm:$0xff]
    %v118 = vld [vmem:[%s3 + $0xb0] sm:$0xff]
    %v119 = vld [vmem:[%s3 + $0xb8] sm:$0xff]
    %121 = vset.pattern.permute.xlu0 0
    %122 = vperm.xlu0 %121, %v96
    %v123 = vpop.permute.xlu0 %122
    %126 = vset.pattern.permute.xlu0 0
    %127 = vperm.xlu0 %126, %v97
    %v128 = vpop.permute.xlu0 %127
    %131 = vset.pattern.permute.xlu0 0
    %132 = vperm.xlu0 %131, %v98
    %v133 = vpop.permute.xlu0 %132
    %136 = vset.pattern.permute.xlu0 0
    %137 = vperm.xlu0 %136, %v99
    %v138 = vpop.permute.xlu0 %137
    %141 = vset.pattern.permute.xlu0 0
    %142 = vperm.xlu0 %141, %v100
    %v143 = vpop.permute.xlu0 %142
    %146 = vset.pattern.permute.xlu0 0
    %147 = vperm.xlu0 %146, %v101
    %v148 = vpop.permute.xlu0 %147
    %151 = vset.pattern.permute.xlu0 0
    %152 = vperm.xlu0 %151, %v102
    %v153 = vpop.permute.xlu0 %152
    %156 = vset.pattern.permute.xlu0 0
    %157 = vperm.xlu0 %156, %v103
    %v158 = vpop.permute.xlu0 %157
    %161 = vset.pattern.permute.xlu0 0
    %162 = vperm.xlu0 %161, %v104
    %v163 = vpop.permute.xlu0 %162
    %166 = vset.pattern.permute.xlu0 0
    %167 = vperm.xlu0 %166, %v105
    %v168 = vpop.permute.xlu0 %167
    %171 = vset.pattern.permute.xlu0 0
    %172 = vperm.xlu0 %171, %v106
    %v173 = vpop.permute.xlu0 %172
    %176 = vset.pattern.permute.xlu0 0
    %177 = vperm.xlu0 %176, %v107
    %v178 = vpop.permute.xlu0 %177
    %181 = vset.pattern.permute.xlu0 0
    %182 = vperm.xlu0 %181, %v108
    %v183 = vpop.permute.xlu0 %182
    %186 = vset.pattern.permute.xlu0 0
    %187 = vperm.xlu0 %186, %v109
    %v188 = vpop.permute.xlu0 %187
    %191 = vset.pattern.permute.xlu0 0
    %192 = vperm.xlu0 %191, %v110
    %v193 = vpop.permute.xlu0 %192
    %196 = vset.pattern.permute.xlu0 0
    %197 = vperm.xlu0 %196, %v111
    %v198 = vpop.permute.xlu0 %197
    %201 = vset.pattern.permute.xlu0 0
    %202 = vperm.xlu0 %201, %v112
    %v203 = vpop.permute.xlu0 %202
    %206 = vset.pattern.permute.xlu0 0
    %207 = vperm.xlu0 %206, %v113
    %v208 = vpop.permute.xlu0 %207
    %211 = vset.pattern.permute.xlu0 0
    %212 = vperm.xlu0 %211, %v114
    %v213 = vpop.permute.xlu0 %212
    %216 = vset.pattern.permute.xlu0 0
    %217 = vperm.xlu0 %216, %v115
    %v218 = vpop.permute.xlu0 %217
    %221 = vset.pattern.permute.xlu0 0
    %222 = vperm.xlu0 %221, %v116
    %v223 = vpop.permute.xlu0 %222
    %226 = vset.pattern.permute.xlu0 0
    %227 = vperm.xlu0 %226, %v117
    %v228 = vpop.permute.xlu0 %227
    %231 = vset.pattern.permute.xlu0 0
    %232 = vperm.xlu0 %231, %v118
    %v233 = vpop.permute.xlu0 %232
    %236 = vset.pattern.permute.xlu0 0
    %237 = vperm.xlu0 %236, %v119
    %v238 = vpop.permute.xlu0 %237
    %v264 = vunpack.c.l.b16 %v72
    %v265 = vunpack.c.l.b16 %v73
    %v266 = vunpack.c.l.b16 %v74
    %v267 = vunpack.c.l.b16 %v75
    %v268 = vunpack.c.l.b16 %v76
    %v269 = vunpack.c.l.b16 %v77
    %v270 = vunpack.c.l.b16 %v78
    %v271 = vunpack.c.l.b16 %v79
    %v272 = vunpack.c.l.b16 %v80
    %v273 = vunpack.c.l.b16 %v81
    %v274 = vunpack.c.l.b16 %v82
    %v275 = vunpack.c.l.b16 %v83
    %v276 = vunpack.c.l.b16 %v84
    %v277 = vunpack.c.l.b16 %v85
    %v278 = vunpack.c.l.b16 %v86
    %v279 = vunpack.c.l.b16 %v87
    %v280 = vunpack.c.l.b16 %v88
    %v281 = vunpack.c.l.b16 %v89
    %v282 = vunpack.c.l.b16 %v90
    %v283 = vunpack.c.l.b16 %v91
    %v284 = vunpack.c.l.b16 %v92
    %v285 = vunpack.c.l.b16 %v93
    %v286 = vunpack.c.l.b16 %v94
    %v287 = vunpack.c.l.b16 %v95
    %v288 = vpack.c.b16 %v265, %v264
    %v289 = vpack.c.b16 %v267, %v266
    %v290 = vpack.c.b16 %v269, %v268
    %v291 = vpack.c.b16 %v271, %v270
    %v292 = vpack.c.b16 %v273, %v272
    %v293 = vpack.c.b16 %v275, %v274
    %v294 = vpack.c.b16 %v277, %v276
    %v295 = vpack.c.b16 %v279, %v278
    %v296 = vpack.c.b16 %v281, %v280
    %v297 = vpack.c.b16 %v283, %v282
    %v298 = vpack.c.b16 %v285, %v284
    %v299 = vpack.c.b16 %v287, %v286
    %vm300 = vcmask 408576
    %v302 = vsel %vm300, %v288, 0
    %v305 = vsel %vm300, %v289, 0
    %v308 = vsel %vm300, %v290, 0
    %v311 = vsel %vm300, %v291, 0
    %v314 = vsel %vm300, %v292, 0
    %v317 = vsel %vm300, %v293, 0
    %v320 = vsel %vm300, %v294, 0
    %v323 = vsel %vm300, %v295, 0
    %v326 = vsel %vm300, %v296, 0
    %v329 = vsel %vm300, %v297, 0
    %v332 = vsel %vm300, %v298, 0
    %v335 = vsel %vm300, %v299, 0
    %v338 = vsel %vm300, %v64, 0
    %v341 = vsel %vm300, %v65, 0
    %v344 = vsel %vm300, %v66, 0
    %v347 = vsel %vm300, %v67, 0
    %v350 = vsel %vm300, %v68, 0
    %v353 = vsel %vm300, %v69, 0
    %v356 = vsel %vm300, %v70, 0
    %v359 = vsel %vm300, %v71, 0
    %361 = vmatprep.subr.bf16.mxu0 0
    %362 = vmatpush1.bf16.xpose.msra.mxu0 %v338
    %363 = vmatprep.subr.bf16.mxu0 0
    %364 = vmatpush1.bf16.xpose.msra.mxu0 %v341
    %365 = vmatprep.subr.bf16.mxu0 0
    %366 = vmatpush1.bf16.xpose.msra.mxu0 %v344
    %367 = vmatprep.subr.bf16.mxu0 0
    %368 = vmatpush1.bf16.xpose.msra.mxu0 %v347
    %369 = vmatprep.subr.bf16.mxu0 0
    %370 = vmatpush1.bf16.xpose.msra.mxu0 %v350
    %371 = vmatprep.subr.bf16.mxu0 0
    %372 = vmatpush1.bf16.xpose.msra.mxu0 %v353
    %373 = vmatprep.subr.bf16.mxu0 0
    %374 = vmatpush1.bf16.xpose.msra.mxu0 %v356
    %375 = vmatprep.subr.bf16.mxu0 0
    %376 = vmatpush1.bf16.xpose.msra.mxu0 %v359
    %377 = vmatprep.subr.bf16.mxu0 0
    %378 = vmatpush1.bf16.xpose.msra.mxu0 0
    %379 = vmatprep.subr.bf16.mxu0 0
    %380 = vmatpush1.bf16.xpose.msra.mxu0 0
    %381 = vmatprep.subr.bf16.mxu0 0
    %382 = vmatpush1.bf16.xpose.msra.mxu0 0
    %383 = vmatprep.subr.bf16.mxu0 0
    %384 = vmatpush1.bf16.xpose.msra.mxu0 0
    %385 = vmatprep.subr.bf16.mxu0 0
    %386 = vmatpush1.bf16.xpose.msra.mxu0 0
    %387 = vmatprep.subr.bf16.mxu0 0
    %388 = vmatpush1.bf16.xpose.msra.mxu0 0
    %389 = vmatprep.subr.bf16.mxu0 0
    %390 = vmatpush1.bf16.xpose.msra.mxu0 0
    %391 = vmatprep.subr.bf16.mxu0 0
    %392 = vmatpush1.bf16.xpose.msra.mxu0 0
    %393 = vmatprep.mubr.bf16.mxu0 0
    %394 = vmatmul.mubr.bf16.gmra.mrb[0].mxu0 %v302
    %v395 = vpop.f32.mrb[0].mxu0
    %v396 = vadd.f32 %v123, %v395
    %v397 = vpop.f32.mrb[0].mxu0
    %v398 = vpop.f32.mrb[0].mxu0
    %v399 = vadd.f32 %v128, %v398
    %v400 = vpop.f32.mrb[0].mxu0
    %401 = vmatprep.mubr.bf16.mxu0 0
    %402 = vmatmul.mubr.bf16.gmra.mrb[0].mxu0 %v305
    %v403 = vpop.f32.mrb[0].mxu0
    %v404 = vadd.f32 %v133, %v403
    %v405 = vpop.f32.mrb[0].mxu0
    %v406 = vpop.f32.mrb[0].mxu0
    %v407 = vadd.f32 %v138, %v406
    %v408 = vpop.f32.mrb[0].mxu0
    %409 = vmatprep.mubr.bf16.mxu0 0
    %410 = vmatmul.mubr.bf16.gmra.mrb[0].mxu0 %v308
    %v411 = vpop.f32.mrb[0].mxu0
    %v412 = vadd.f32 %v143, %v411
    %v413 = vpop.f32.mrb[0].mxu0
    %v414 = vpop.f32.mrb[0].mxu0
    %v415 = vadd.f32 %v148, %v414
    %v416 = vpop.f32.mrb[0].mxu0
    %417 = vmatprep.mubr.bf16.mxu0 0
    %418 = vmatmul.mubr.bf16.gmra.mrb[0].mxu0 %v311
    %v419 = vpop.f32.mrb[0].mxu0
    %v420 = vadd.f32 %v153, %v419
    %v421 = vpop.f32.mrb[0].mxu0
    %v422 = vpop.f32.mrb[0].mxu0
    %v423 = vadd.f32 %v158, %v422
    %v424 = vpop.f32.mrb[0].mxu0
    %425 = vmatprep.mubr.bf16.mxu0 0
    %426 = vmatmul.mubr.bf16.gmra.mrb[0].mxu0 %v314
    %v427 = vpop.f32.mrb[0].mxu0
    %v428 = vadd.f32 %v163, %v427
    %v429 = vpop.f32.mrb[0].mxu0
    %v430 = vpop.f32.mrb[0].mxu0
    %v431 = vadd.f32 %v168, %v430
    %v432 = vpop.f32.mrb[0].mxu0
    %433 = vmatprep.mubr.bf16.mxu0 0
    %434 = vmatmul.mubr.bf16.gmra.mrb[0].mxu0 %v317
    %v435 = vpop.f32.mrb[0].mxu0
    %v436 = vadd.f32 %v173, %v435
    %v437 = vpop.f32.mrb[0].mxu0
    %v438 = vpop.f32.mrb[0].mxu0
    %v439 = vadd.f32 %v178, %v438
    %v440 = vpop.f32.mrb[0].mxu0
    %441 = vmatprep.mubr.bf16.mxu0 0
    %442 = vmatmul.mubr.bf16.gmra.mrb[0].mxu0 %v320
    %v443 = vpop.f32.mrb[0].mxu0
    %v444 = vadd.f32 %v183, %v443
    %v445 = vpop.f32.mrb[0].mxu0
    %v446 = vpop.f32.mrb[0].mxu0
    %v447 = vadd.f32 %v188, %v446
    %v448 = vpop.f32.mrb[0].mxu0
    %449 = vmatprep.mubr.bf16.mxu0 0
    %450 = vmatmul.mubr.bf16.gmra.mrb[0].mxu0 %v323
    %v451 = vpop.f32.mrb[0].mxu0
    %v452 = vadd.f32 %v193, %v451
    %v453 = vpop.f32.mrb[0].mxu0
    %v454 = vpop.f32.mrb[0].mxu0
    %v455 = vadd.f32 %v198, %v454
    %v456 = vpop.f32.mrb[0].mxu0
    %457 = vmatprep.mubr.bf16.mxu0 0
    %458 = vmatmul.mubr.bf16.gmra.mrb[0].mxu0 %v326
    %v459 = vpop.f32.mrb[0].mxu0
    %v460 = vadd.f32 %v203, %v459
    %v461 = vpop.f32.mrb[0].mxu0
    %v462 = vpop.f32.mrb[0].mxu0
    %v463 = vadd.f32 %v208, %v462
    %v464 = vpop.f32.mrb[0].mxu0
    %465 = vmatprep.mubr.bf16.mxu0 0
    %466 = vmatmul.mubr.bf16.gmra.mrb[0].mxu0 %v329
    %v467 = vpop.f32.mrb[0].mxu0
    %v468 = vadd.f32 %v213, %v467
    %v469 = vpop.f32.mrb[0].mxu0
    %v470 = vpop.f32.mrb[0].mxu0
    %v471 = vadd.f32 %v218, %v470
    %v472 = vpop.f32.mrb[0].mxu0
    %473 = vmatprep.mubr.bf16.mxu0 0
    %474 = vmatmul.mubr.bf16.gmra.mrb[0].mxu0 %v332
    %v475 = vpop.f32.mrb[0].mxu0
    %v476 = vadd.f32 %v223, %v475
    %v477 = vpop.f32.mrb[0].mxu0
    %v478 = vpop.f32.mrb[0].mxu0
    %v479 = vadd.f32 %v228, %v478
    %v480 = vpop.f32.mrb[0].mxu0
    %481 = vmatprep.mubr.bf16.mxu0 0
    %482 = vmatmul.mubr.bf16.gmra.mrb[0].mxu0 %v335
    %v483 = vpop.f32.mrb[0].mxu0
    %v484 = vadd.f32 %v233, %v483
    %v485 = vpop.f32.mrb[0].mxu0
    %v486 = vpop.f32.mrb[0].mxu0
    %v487 = vadd.f32 %v238, %v486
    %v488 = vpop.f32.mrb[0].mxu0
    %489 = vdwg.mxu0
    %v490 = vmax.f32 %v396, 0.0
    %v491 = vmax.f32 %v399, 0.0
    %v492 = vmax.f32 %v404, 0.0
    %v493 = vmax.f32 %v407, 0.0
    %v494 = vmax.f32 %v412, 0.0
    %v495 = vmax.f32 %v415, 0.0
    %v496 = vmax.f32 %v420, 0.0
    %v497 = vmax.f32 %v423, 0.0
    %v498 = vmax.f32 %v428, 0.0
    %v499 = vmax.f32 %v431, 0.0
    %v500 = vmax.f32 %v436, 0.0
    %v501 = vmax.f32 %v439, 0.0
    %v502 = vmax.f32 %v444, 0.0
    %v503 = vmax.f32 %v447, 0.0
    %v504 = vmax.f32 %v452, 0.0
    %v505 = vmax.f32 %v455, 0.0
    %v506 = vmax.f32 %v460, 0.0
    %v507 = vmax.f32 %v463, 0.0
    %v508 = vmax.f32 %v468, 0.0
    %v509 = vmax.f32 %v471, 0.0
    %v510 = vmax.f32 %v476, 0.0
    %v511 = vmax.f32 %v479, 0.0
    %v512 = vmax.f32 %v484, 0.0
    %v513 = vmax.f32 %v487, 0.0
    %v514 = vpack.c.bf16 %v491, %v490
    %v515 = vpack.c.bf16 %v493, %v492
    %v516 = vpack.c.bf16 %v495, %v494
    %v517 = vpack.c.bf16 %v497, %v496
    %v518 = vpack.c.bf16 %v499, %v498
    %v519 = vpack.c.bf16 %v501, %v500
    %v520 = vpack.c.bf16 %v503, %v502
    %v521 = vpack.c.bf16 %v505, %v504
    %v522 = vpack.c.bf16 %v507, %v506
    %v523 = vpack.c.bf16 %v509, %v508
    %v524 = vpack.c.bf16 %v511, %v510
    %v525 = vpack.c.bf16 %v513, %v512
    %v526 = vld [vmem:[%s4] sm:$0xff]
    %v527 = vld [vmem:[%s4 + $0x8] sm:$0xff]
    %v528 = vld [vmem:[%s4 + $0x10] sm:$0xff]
    %v529 = vld [vmem:[%s4 + $0x18] sm:$0xff]
    %v530 = vld [vmem:[%s4 + $0x20] sm:$0xff]
    %v531 = vld [vmem:[%s4 + $0x28] sm:$0xff]
    %v532 = vld [vmem:[%s4 + $0x30] sm:$0xff]
    %v533 = vld [vmem:[%s4 + $0x38] sm:$0xff]
    %v534 = vld [vmem:[%s4 + $0x40] sm:$0xff]
    %v535 = vld [vmem:[%s4 + $0x48] sm:$0xff]
    %v536 = vld [vmem:[%s4 + $0x50] sm:$0xff]
    %v537 = vld [vmem:[%s4 + $0x58] sm:$0xff]
    %v538 = vld [vmem:[%s4 + $0x60] sm:$0xff]
    %v539 = vld [vmem:[%s4 + $0x68] sm:$0xff]
    %v540 = vld [vmem:[%s4 + $0x70] sm:$0xff]
    %v541 = vld [vmem:[%s4 + $0x78] sm:$0xff]
    %v542 = vld [vmem:[%s4 + $0x80] sm:$0xff]
    %v543 = vld [vmem:[%s4 + $0x88] sm:$0xff]
    %v544 = vld [vmem:[%s4 + $0x90] sm:$0xff]
    %v545 = vld [vmem:[%s4 + $0x98] sm:$0xff]
    %v546 = vld [vmem:[%s4 + $0xa0] sm:$0xff]
    %v547 = vld [vmem:[%s4 + $0xa8] sm:$0xff]
    %v548 = vld [vmem:[%s4 + $0xb0] sm:$0xff]
    %v549 = vld [vmem:[%s4 + $0xb8] sm:$0xff]
    %v550 = vld [vmem:[%s4 + $0xc0] sm:$0xff]
    %v551 = vld [vmem:[%s4 + $0xc8] sm:$0xff]
    %v552 = vld [vmem:[%s4 + $0xd0] sm:$0xff]
    %v553 = vld [vmem:[%s5] sm:$0xff]
    %v554 = vld [vmem:[%s5 + $0x8] sm:$0xff]
    %v555 = vld [vmem:[%s5 + $0x10] sm:$0xff]
    %v556 = vld [vmem:[%s5 + $0x18] sm:$0xff]
    %v557 = vld [vmem:[%s5 + $0x20] sm:$0xff]
    %v558 = vld [vmem:[%s5 + $0x28] sm:$0xff]
    %v559 = vld [vmem:[%s5 + $0x30] sm:$0xff]
    %v560 = vld [vmem:[%s5 + $0x38] sm:$0xff]
    %v561 = vld [vmem:[%s5 + $0x40] sm:$0xff]
    %v562 = vld [vmem:[%s5 + $0x48] sm:$0xff]
    %v563 = vld [vmem:[%s5 + $0x50] sm:$0xff]
    %v564 = vld [vmem:[%s5 + $0x58] sm:$0xff]
    %v565 = vld [vmem:[%s5 + $0x60] sm:$0xff]
    %v566 = vld [vmem:[%s5 + $0x68] sm:$0xff]
    %v567 = vld [vmem:[%s5 + $0x70] sm:$0xff]
    %v568 = vld [vmem:[%s5 + $0x78] sm:$0xff]
    %v569 = vld [vmem:[%s5 + $0x80] sm:$0xff]
    %v570 = vld [vmem:[%s5 + $0x88] sm:$0xff]
    %v571 = vld [vmem:[%s5 + $0x90] sm:$0xff]
    %v572 = vld [vmem:[%s5 + $0x98] sm:$0xff]
    %v573 = vld [vmem:[%s5 + $0xa0] sm:$0xff]
    %v574 = vld [vmem:[%s5 + $0xa8] sm:$0xff]
    %v575 = vld [vmem:[%s5 + $0xb0] sm:$0xff]
    %v576 = vld [vmem:[%s5 + $0xb8] sm:$0xff]
    %v577 = vld [vmem:[%s5 + $0xc0] sm:$0xff]
    %v578 = vld [vmem:[%s5 + $0xc8] sm:$0xff]
    %v579 = vld [vmem:[%s5 + $0xd0] sm:$0xff]
    %581 = vset.pattern.permute.xlu0 0
    %582 = vperm.xlu0 %581, %v553
    %v583 = vpop.permute.xlu0 %582
    %586 = vset.pattern.permute.xlu0 0
    %587 = vperm.xlu0 %586, %v554
    %v588 = vpop.permute.xlu0 %587
    %591 = vset.pattern.permute.xlu0 0
    %592 = vperm.xlu0 %591, %v555
    %v593 = vpop.permute.xlu0 %592
    %596 = vset.pattern.permute.xlu0 0
    %597 = vperm.xlu0 %596, %v556
    %v598 = vpop.permute.xlu0 %597
    %601 = vset.pattern.permute.xlu0 0
    %602 = vperm.xlu0 %601, %v557
    %v603 = vpop.permute.xlu0 %602
    %606 = vset.pattern.permute.xlu0 0
    %607 = vperm.xlu0 %606, %v558
    %v608 = vpop.permute.xlu0 %607
    %611 = vset.pattern.permute.xlu0 0
    %612 = vperm.xlu0 %611, %v559
    %v613 = vpop.permute.xlu0 %612
    %616 = vset.pattern.permute.xlu0 0
    %617 = vperm.xlu0 %616, %v560
    %v618 = vpop.permute.xlu0 %617
    %621 = vset.pattern.permute.xlu0 0
    %622 = vperm.xlu0 %621, %v561
    %v623 = vpop.permute.xlu0 %622
    %626 = vset.pattern.permute.xlu0 0
    %627 = vperm.xlu0 %626, %v562
    %v628 = vpop.permute.xlu0 %627
    %631 = vset.pattern.permute.xlu0 0
    %632 = vperm.xlu0 %631, %v563
    %v633 = vpop.permute.xlu0 %632
    %636 = vset.pattern.permute.xlu0 0
    %637 = vperm.xlu0 %636, %v564
    %v638 = vpop.permute.xlu0 %637
    %641 = vset.pattern.permute.xlu0 0
    %642 = vperm.xlu0 %641, %v565
    %v643 = vpop.permute.xlu0 %642
    %646 = vset.pattern.permute.xlu0 0
    %647 = vperm.xlu0 %646, %v566
    %v648 = vpop.permute.xlu0 %647
    %651 = vset.pattern.permute.xlu0 0
    %652 = vperm.xlu0 %651, %v567
    %v653 = vpop.permute.xlu0 %652
    %656 = vset.pattern.permute.xlu0 0
    %657 = vperm.xlu0 %656, %v568
    %v658 = vpop.permute.xlu0 %657
    %661 = vset.pattern.permute.xlu0 0
    %662 = vperm.xlu0 %661, %v569
    %v663 = vpop.permute.xlu0 %662
    %666 = vset.pattern.permute.xlu0 0
    %667 = vperm.xlu0 %666, %v570
    %v668 = vpop.permute.xlu0 %667
    %671 = vset.pattern.permute.xlu0 0
    %672 = vperm.xlu0 %671, %v571
    %v673 = vpop.permute.xlu0 %672
    %676 = vset.pattern.permute.xlu0 0
    %677 = vperm.xlu0 %676, %v572
    %v678 = vpop.permute.xlu0 %677
    %681 = vset.pattern.permute.xlu0 0
    %682 = vperm.xlu0 %681, %v573
    %v683 = vpop.permute.xlu0 %682
    %686 = vset.pattern.permute.xlu0 0
    %687 = vperm.xlu0 %686, %v574
    %v688 = vpop.permute.xlu0 %687
    %691 = vset.pattern.permute.xlu0 0
    %692 = vperm.xlu0 %691, %v575
    %v693 = vpop.permute.xlu0 %692
    %696 = vset.pattern.permute.xlu0 0
    %697 = vperm.xlu0 %696, %v576
    %v698 = vpop.permute.xlu0 %697
    %701 = vset.pattern.permute.xlu0 0
    %702 = vperm.xlu0 %701, %v577
    %v703 = vpop.permute.xlu0 %702
    %706 = vset.pattern.permute.xlu0 0
    %707 = vperm.xlu0 %706, %v578
    %v708 = vpop.permute.xlu0 %707
    %711 = vset.pattern.permute.xlu0 0
    %712 = vperm.xlu0 %711, %v579
    %v713 = vpop.permute.xlu0 %712
    %v742 = vunpack.c.l.b16 %v526
    %v743 = vunpack.c.h.b16 %v526
    %v744 = vunpack.c.l.b16 %v527
    %v745 = vunpack.c.h.b16 %v527
    %v746 = vunpack.c.l.b16 %v528
    %v747 = vunpack.c.h.b16 %v528
    %v748 = vunpack.c.l.b16 %v529
    %v749 = vunpack.c.h.b16 %v529
    %v750 = vunpack.c.l.b16 %v530
    %v751 = vunpack.c.h.b16 %v530
    %v752 = vunpack.c.l.b16 %v531
    %v753 = vunpack.c.h.b16 %v531
    %v754 = vunpack.c.l.b16 %v532
    %v755 = vunpack.c.h.b16 %v532
    %v756 = vunpack.c.l.b16 %v533
    %v757 = vunpack.c.h.b16 %v533
    %v758 = vunpack.c.l.b16 %v534
    %v759 = vunpack.c.h.b16 %v534
    %v760 = vunpack.c.l.b16 %v535
    %v761 = vunpack.c.h.b16 %v535
    %v762 = vunpack.c.l.b16 %v536
    %v763 = vunpack.c.h.b16 %v536
    %v764 = vunpack.c.l.b16 %v537
    %v765 = vunpack.c.h.b16 %v537
    %v766 = vunpack.c.l.b16 %v538
    %v767 = vunpack.c.h.b16 %v538
    %v768 = vunpack.c.l.b16 %v539
    %v769 = vunpack.c.h.b16 %v539
    %v770 = vunpack.c.l.b16 %v540
    %v771 = vunpack.c.h.b16 %v540
    %v772 = vunpack.c.l.b16 %v541
    %v773 = vunpack.c.h.b16 %v541
    %v774 = vunpack.c.l.b16 %v542
    %v775 = vunpack.c.h.b16 %v542
    %v776 = vunpack.c.l.b16 %v543
    %v777 = vunpack.c.h.b16 %v543
    %v778 = vunpack.c.l.b16 %v544
    %v779 = vunpack.c.h.b16 %v544
    %v780 = vunpack.c.l.b16 %v545
    %v781 = vunpack.c.h.b16 %v545
    %v782 = vunpack.c.l.b16 %v546
    %v783 = vunpack.c.h.b16 %v546
    %v784 = vunpack.c.l.b16 %v547
    %v785 = vunpack.c.h.b16 %v547
    %v786 = vunpack.c.l.b16 %v548
    %v787 = vunpack.c.h.b16 %v548
    %v788 = vunpack.c.l.b16 %v549
    %v789 = vunpack.c.h.b16 %v549
    %v790 = vunpack.c.l.b16 %v550
    %v791 = vunpack.c.h.b16 %v550
    %v792 = vunpack.c.l.b16 %v551
    %v793 = vunpack.c.h.b16 %v551
    %v794 = vunpack.c.l.b16 %v552
    %v795 = vunpack.c.h.b16 %v552
    %v796 = vpack.c.b16 %v744, %v742
    %v797 = vpack.c.b16 %v745, %v743
    %v798 = vpack.c.b16 %v748, %v746
    %v799 = vpack.c.b16 %v749, %v747
    %v800 = vpack.c.b16 %v752, %v750
    %v801 = vpack.c.b16 %v753, %v751
    %v802 = vpack.c.b16 %v756, %v754
    %v803 = vpack.c.b16 %v757, %v755
    %v804 = vpack.c.b16 %v760, %v758
    %v805 = vpack.c.b16 %v761, %v759
    %v806 = vpack.c.b16 %v764, %v762
    %v807 = vpack.c.b16 %v765, %v763
    %v808 = vpack.c.b16 %v768, %v766
    %v809 = vpack.c.b16 %v769, %v767
    %v810 = vpack.c.b16 %v772, %v770
    %v811 = vpack.c.b16 %v773, %v771
    %v812 = vpack.c.b16 %v776, %v774
    %v813 = vpack.c.b16 %v777, %v775
    %v814 = vpack.c.b16 %v780, %v778
    %v815 = vpack.c.b16 %v781, %v779
    %v816 = vpack.c.b16 %v784, %v782
    %v817 = vpack.c.b16 %v785, %v783
    %v818 = vpack.c.b16 %v788, %v786
    %v819 = vpack.c.b16 %v789, %v787
    %v820 = vpack.c.b16 %v792, %v790
    %v821 = vpack.c.b16 %v793, %v791
    %v822 = vpack.c.b16 %v794, %v794
    %v823 = vpack.c.b16 %v795, %v795
    %vm838 = vcmask 523264
    %v840 = vsel %vm838, %v797, 0
    %v843 = vsel %vm838, %v799, 0
    %v846 = vsel %vm838, %v801, 0
    %v849 = vsel %vm838, %v803, 0
    %v852 = vsel %vm838, %v805, 0
    %v855 = vsel %vm838, %v807, 0
    %v858 = vsel %vm838, %v809, 0
    %v861 = vsel %vm838, %v811, 0
    %v864 = vsel %vm838, %v813, 0
    %v867 = vsel %vm838, %v815, 0
    %v870 = vsel %vm838, %v817, 0
    %v873 = vsel %vm838, %v819, 0
    %v876 = vsel %vm838, %v821, 0
    %v879 = vsel %vm838, %v823, 0
    %881 = vmatprep.subr.bf16.mxu0 0
    %882 = vmatpush1.bf16.msra.mxu0 %v514
    %883 = vmatprep.subr.bf16.mxu0 0
    %884 = vmatpush1.bf16.msra.mxu0 %v515
    %885 = vmatprep.subr.bf16.mxu0 0
    %886 = vmatpush1.bf16.msra.mxu0 %v516
    %887 = vmatprep.subr.bf16.mxu0 0
    %888 = vmatpush1.bf16.msra.mxu0 %v517
    %889 = vmatprep.subr.bf16.mxu0 0
    %890 = vmatpush1.bf16.msra.mxu0 %v518
    %891 = vmatprep.subr.bf16.mxu0 0
    %892 = vmatpush1.bf16.msra.mxu0 %v519
    %893 = vmatprep.subr.bf16.mxu0 0
    %894 = vmatpush1.bf16.msra.mxu0 %v520
    %895 = vmatprep.subr.bf16.mxu0 0
    %896 = vmatpush1.bf16.msra.mxu0 %v521
    %897 = vmatprep.subr.bf16.mxu0 0
    %898 = vmatpush1.bf16.msra.mxu0 %v522
    %899 = vmatprep.subr.bf16.mxu0 0
    %900 = vmatpush1.bf16.msra.mxu0 %v523
    %901 = vmatprep.subr.bf16.mxu0 0
    %902 = vmatpush1.bf16.msra.mxu0 %v524
    %903 = vmatprep.subr.bf16.mxu0 0
    %904 = vmatpush1.bf16.msra.mxu0 %v525
    %905 = vmatprep.subr.bf16.mxu0 0
    %906 = vmatpush1.bf16.msra.mxu0 0
    %907 = vmatprep.subr.bf16.mxu0 0
    %908 = vmatpush1.bf16.msra.mxu0 0
    %909 = vmatprep.subr.bf16.mxu0 0
    %910 = vmatpush1.bf16.msra.mxu0 0
    %911 = vmatprep.subr.bf16.mxu0 0
    %912 = vmatpush1.bf16.msra.mxu0 0
    %913 = vmatprep.mubr.bf16.mxu0 %v840
    %914 = vmatmul.mubr.bf16.gmra.mrb[0].mxu0 %v796
    %v915 = vpop.f32.mrb[0].mxu0
    %v916 = vadd.f32 %v583, %v915
    %v917 = vpop.f32.mrb[0].mxu0
    %v918 = vpop.f32.mrb[0].mxu0
    %v919 = vadd.f32 %v588, %v918
    %v920 = vpop.f32.mrb[0].mxu0
    %921 = vmatprep.mubr.bf16.mxu0 %v843
    %922 = vmatmul.mubr.bf16.gmra.mrb[0].mxu0 %v798
    %v923 = vpop.f32.mrb[0].mxu0
    %v924 = vadd.f32 %v593, %v923
    %v925 = vpop.f32.mrb[0].mxu0
    %v926 = vpop.f32.mrb[0].mxu0
    %v927 = vadd.f32 %v598, %v926
    %v928 = vpop.f32.mrb[0].mxu0
    %929 = vmatprep.mubr.bf16.mxu0 %v846
    %930 = vmatmul.mubr.bf16.gmra.mrb[0].mxu0 %v800
    %v931 = vpop.f32.mrb[0].mxu0
    %v932 = vadd.f32 %v603, %v931
    %v933 = vpop.f32.mrb[0].mxu0
    %v934 = vpop.f32.mrb[0].mxu0
    %v935 = vadd.f32 %v608, %v934
    %v936 = vpop.f32.mrb[0].mxu0
    %937 = vmatprep.mubr.bf16.mxu0 %v849
    %938 = vmatmul.mubr.bf16.gmra.mrb[0].mxu0 %v802
    %v939 = vpop.f32.mrb[0].mxu0
    %v940 = vadd.f32 %v613, %v939
    %v941 = vpop.f32.mrb[0].mxu0
    %v942 = vpop.f32.mrb[0].mxu0
    %v943 = vadd.f32 %v618, %v942
    %v944 = vpop.f32.mrb[0].mxu0
    %945 = vmatprep.mubr.bf16.mxu0 %v852
    %946 = vmatmul.mubr.bf16.gmra.mrb[0].mxu0 %v804
    %v947 = vpop.f32.mrb[0].mxu0
    %v948 = vadd.f32 %v623, %v947
    %v949 = vpop.f32.mrb[0].mxu0
    %v950 = vpop.f32.mrb[0].mxu0
    %v951 = vadd.f32 %v628, %v950
    %v952 = vpop.f32.mrb[0].mxu0
    %953 = vmatprep.mubr.bf16.mxu0 %v855
    %954 = vmatmul.mubr.bf16.gmra.mrb[0].mxu0 %v806
    %v955 = vpop.f32.mrb[0].mxu0
    %v956 = vadd.f32 %v633, %v955
    %v957 = vpop.f32.mrb[0].mxu0
    %v958 = vpop.f32.mrb[0].mxu0
    %v959 = vadd.f32 %v638, %v958
    %v960 = vpop.f32.mrb[0].mxu0
    %961 = vmatprep.mubr.bf16.mxu0 %v858
    %962 = vmatmul.mubr.bf16.gmra.mrb[0].mxu0 %v808
    %v963 = vpop.f32.mrb[0].mxu0
    %v964 = vadd.f32 %v643, %v963
    %v965 = vpop.f32.mrb[0].mxu0
    %v966 = vpop.f32.mrb[0].mxu0
    %v967 = vadd.f32 %v648, %v966
    %v968 = vpop.f32.mrb[0].mxu0
    %969 = vmatprep.mubr.bf16.mxu0 %v861
    %970 = vmatmul.mubr.bf16.gmra.mrb[0].mxu0 %v810
    %v971 = vpop.f32.mrb[0].mxu0
    %v972 = vadd.f32 %v653, %v971
    %v973 = vpop.f32.mrb[0].mxu0
    %v974 = vpop.f32.mrb[0].mxu0
    %v975 = vadd.f32 %v658, %v974
    %v976 = vpop.f32.mrb[0].mxu0
    %977 = vmatprep.mubr.bf16.mxu0 %v864
    %978 = vmatmul.mubr.bf16.gmra.mrb[0].mxu0 %v812
    %v979 = vpop.f32.mrb[0].mxu0
    %v980 = vadd.f32 %v663, %v979
    %v981 = vpop.f32.mrb[0].mxu0
    %v982 = vpop.f32.mrb[0].mxu0
    %v983 = vadd.f32 %v668, %v982
    %v984 = vpop.f32.mrb[0].mxu0
    %985 = vmatprep.mubr.bf16.mxu0 %v867
    %986 = vmatmul.mubr.bf16.gmra.mrb[0].mxu0 %v814
    %v987 = vpop.f32.mrb[0].mxu0
    %v988 = vadd.f32 %v673, %v987
    %v989 = vpop.f32.mrb[0].mxu0
    %v990 = vpop.f32.mrb[0].mxu0
    %v991 = vadd.f32 %v678, %v990
    %v992 = vpop.f32.mrb[0].mxu0
    %993 = vmatprep.mubr.bf16.mxu0 %v870
    %994 = vmatmul.mubr.bf16.gmra.mrb[0].mxu0 %v816
    %v995 = vpop.f32.mrb[0].mxu0
    %v996 = vadd.f32 %v683, %v995
    %v997 = vpop.f32.mrb[0].mxu0
    %v998 = vpop.f32.mrb[0].mxu0
    %v999 = vadd.f32 %v688, %v998
    %v1000 = vpop.f32.mrb[0].mxu0
    %1001 = vmatprep.mubr.bf16.mxu0 %v873
    %1002 = vmatmul.mubr.bf16.gmra.mrb[0].mxu0 %v818
    %v1003 = vpop.f32.mrb[0].mxu0
    %v1004 = vadd.f32 %v693, %v1003
    %v1005 = vpop.f32.mrb[0].mxu0
    %v1006 = vpop.f32.mrb[0].mxu0
    %v1007 = vadd.f32 %v698, %v1006
    %v1008 = vpop.f32.mrb[0].mxu0
    %1009 = vmatprep.mubr.bf16.mxu0 %v876
    %1010 = vmatmul.mubr.bf16.gmra.mrb[0].mxu0 %v820
    %v1011 = vpop.f32.mrb[0].mxu0
    %v1012 = vadd.f32 %v703, %v1011
    %v1013 = vpop.f32.mrb[0].mxu0
    %v1014 = vpop.f32.mrb[0].mxu0
    %v1015 = vadd.f32 %v708, %v1014
    %v1016 = vpop.f32.mrb[0].mxu0
    %1017 = vmatprep.mubr.bf16.mxu0 %v879
    %1018 = vmatmul.mubr.bf16.gmra.mrb[0].mxu0 %v822
    %v1019 = vpop.f32.mrb[0].mxu0
    %v1020 = vadd.f32 %v713, %v1019
    %v1021 = vpop.f32.mrb[0].mxu0
    %v1022 = vpop.f32.mrb[0].mxu0
    %v1023 = vpop.f32.mrb[0].mxu0
    %1024 = vdwg.mxu0
    %v1025 = vmax.f32 %v916, 0.0
    %v1026 = vmax.f32 %v919, 0.0
    %v1027 = vmax.f32 %v924, 0.0
    %v1028 = vmax.f32 %v927, 0.0
    %v1029 = vmax.f32 %v932, 0.0
    %v1030 = vmax.f32 %v935, 0.0
    %v1031 = vmax.f32 %v940, 0.0
    %v1032 = vmax.f32 %v943, 0.0
    %v1033 = vmax.f32 %v948, 0.0
    %v1034 = vmax.f32 %v951, 0.0
    %v1035 = vmax.f32 %v956, 0.0
    %v1036 = vmax.f32 %v959, 0.0
    %v1037 = vmax.f32 %v964, 0.0
    %v1038 = vmax.f32 %v967, 0.0
    %v1039 = vmax.f32 %v972, 0.0
    %v1040 = vmax.f32 %v975, 0.0
    %v1041 = vmax.f32 %v980, 0.0
    %v1042 = vmax.f32 %v983, 0.0
    %v1043 = vmax.f32 %v988, 0.0
    %v1044 = vmax.f32 %v991, 0.0
    %v1045 = vmax.f32 %v996, 0.0
    %v1046 = vmax.f32 %v999, 0.0
    %v1047 = vmax.f32 %v1004, 0.0
    %v1048 = vmax.f32 %v1007, 0.0
    %v1049 = vmax.f32 %v1012, 0.0
    %v1050 = vmax.f32 %v1015, 0.0
    %v1051 = vmax.f32 %v1020, 0.0
    %v1052 = vpack.c.bf16 %v1026, %v1025
    %v1053 = vpack.c.bf16 %v1028, %v1027
    %v1054 = vpack.c.bf16 %v1030, %v1029
    %v1055 = vpack.c.bf16 %v1032, %v1031
    %v1056 = vpack.c.bf16 %v1034, %v1033
    %v1057 = vpack.c.bf16 %v1036, %v1035
    %v1058 = vpack.c.bf16 %v1038, %v1037
    %v1059 = vpack.c.bf16 %v1040, %v1039
    %v1060 = vpack.c.bf16 %v1042, %v1041
    %v1061 = vpack.c.bf16 %v1044, %v1043
    %v1062 = vpack.c.bf16 %v1046, %v1045
    %v1063 = vpack.c.bf16 %v1048, %v1047
    %v1064 = vpack.c.bf16 %v1050, %v1049
    %v1065 = vpack.c.bf16 %v1051, %v1051
    %v1066 = vld [vmem:[%s6] sm:$0xff]
    %v1067 = vld [vmem:[%s6 + $0x8] sm:$0xff]
    %v1068 = vld [vmem:[%s6 + $0x10] sm:$0xff]
    %v1069 = vld [vmem:[%s6 + $0x18] sm:$0xff]
    %v1070 = vld [vmem:[%s6 + $0x20] sm:$0xff]
    %v1071 = vld [vmem:[%s6 + $0x28] sm:$0xff]
    %v1072 = vld [vmem:[%s6 + $0x30] sm:$0xff]
    %v1073 = vld [vmem:[%s6 + $0x38] sm:$0xff]
    %v1074 = vld [vmem:[%s6 + $0x40] sm:$0xff]
    %v1075 = vld [vmem:[%s6 + $0x48] sm:$0xff]
    %v1076 = vld [vmem:[%s6 + $0x50] sm:$0xff]
    %v1077 = vld [vmem:[%s6 + $0x58] sm:$0xff]
    %v1078 = vld [vmem:[%s6 + $0x60] sm:$0x33]
    %v1079 = vld [vmem:[%s7] sm:$0xff]
    %v1080 = vld [vmem:[%s7 + $0x8] sm:$0xff]
    %v1081 = vld [vmem:[%s7 + $0x10] sm:$0xff]
    %v1082 = vld [vmem:[%s7 + $0x18] sm:$0xff]
    %v1083 = vld [vmem:[%s7 + $0x20] sm:$0xff]
    %v1084 = vld [vmem:[%s7 + $0x28] sm:$0xff]
    %v1085 = vld [vmem:[%s7 + $0x30] sm:$0xff]
    %v1086 = vld [vmem:[%s7 + $0x38] sm:$0xff]
    %v1087 = vld [vmem:[%s7 + $0x40] sm:$0xff]
    %v1088 = vld [vmem:[%s7 + $0x48] sm:$0xff]
    %v1089 = vld [vmem:[%s7 + $0x50] sm:$0xff]
    %v1090 = vld [vmem:[%s7 + $0x58] sm:$0xff]
    %v1091 = vld [vmem:[%s7 + $0x60] sm:$0xf]
    %v1092 = vld [vmem:[%s1] sm:$0x1]
    %1094 = vset.pattern.permute.xlu0 0
    %1095 = vperm.xlu0 %1094, %v1079
    %v1096 = vpop.permute.xlu0 %1095
    %1099 = vset.pattern.permute.xlu0 0
    %1100 = vperm.xlu0 %1099, %v1080
    %v1101 = vpop.permute.xlu0 %1100
    %1104 = vset.pattern.permute.xlu0 0
    %1105 = vperm.xlu0 %1104, %v1081
    %v1106 = vpop.permute.xlu0 %1105
    %1109 = vset.pattern.permute.xlu0 0
    %1110 = vperm.xlu0 %1109, %v1082
    %v1111 = vpop.permute.xlu0 %1110
    %1114 = vset.pattern.permute.xlu0 0
    %1115 = vperm.xlu0 %1114, %v1083
    %v1116 = vpop.permute.xlu0 %1115
    %1119 = vset.pattern.permute.xlu0 0
    %1120 = vperm.xlu0 %1119, %v1084
    %v1121 = vpop.permute.xlu0 %1120
    %1124 = vset.pattern.permute.xlu0 0
    %1125 = vperm.xlu0 %1124, %v1085
    %v1126 = vpop.permute.xlu0 %1125
    %1129 = vset.pattern.permute.xlu0 0
    %1130 = vperm.xlu0 %1129, %v1086
    %v1131 = vpop.permute.xlu0 %1130
    %1134 = vset.pattern.permute.xlu0 0
    %1135 = vperm.xlu0 %1134, %v1087
    %v1136 = vpop.permute.xlu0 %1135
    %1139 = vset.pattern.permute.xlu0 0
    %1140 = vperm.xlu0 %1139, %v1088
    %v1141 = vpop.permute.xlu0 %1140
    %1144 = vset.pattern.permute.xlu0 0
    %1145 = vperm.xlu0 %1144, %v1089
    %v1146 = vpop.permute.xlu0 %1145
    %1149 = vset.pattern.permute.xlu0 0
    %1150 = vperm.xlu0 %1149, %v1090
    %v1151 = vpop.permute.xlu0 %1150
    %1154 = vset.pattern.permute.xlu0 0
    %1155 = vperm.xlu0 %1154, %v1091
    %v1156 = vpop.permute.xlu0 %1155
    %v1159 = vlaneseq
    %v1160 = vshrl.u32 %v1159, 7
    %v1161 = vsub.s32 0, %v1160
    %v1162 = vrot.slane %v1092, %v1161
    %v1164 = vmul.f32 %v1096, %v1162
    %v1165 = vmul.f32 %v1101, %v1162
    %v1166 = vmul.f32 %v1106, %v1162
    %v1167 = vmul.f32 %v1111, %v1162
    %v1168 = vmul.f32 %v1116, %v1162
    %v1169 = vmul.f32 %v1121, %v1162
    %v1170 = vmul.f32 %v1126, %v1162
    %v1171 = vmul.f32 %v1131, %v1162
    %v1172 = vmul.f32 %v1136, %v1162
    %v1173 = vmul.f32 %v1141, %v1162
    %v1174 = vmul.f32 %v1146, %v1162
    %v1175 = vmul.f32 %v1151, %v1162
    %v1176 = vmul.f32 %v1156, %v1162
    %v1190 = vunpack.c.l.b16 %v1066
    %v1191 = vunpack.c.h.b16 %v1066
    %v1192 = vunpack.c.l.b16 %v1067
    %v1193 = vunpack.c.h.b16 %v1067
    %v1194 = vunpack.c.l.b16 %v1068
    %v1195 = vunpack.c.h.b16 %v1068
    %v1196 = vunpack.c.l.b16 %v1069
    %v1197 = vunpack.c.h.b16 %v1069
    %v1198 = vunpack.c.l.b16 %v1070
    %v1199 = vunpack.c.h.b16 %v1070
    %v1200 = vunpack.c.l.b16 %v1071
    %v1201 = vunpack.c.h.b16 %v1071
    %v1202 = vunpack.c.l.b16 %v1072
    %v1203 = vunpack.c.h.b16 %v1072
    %v1204 = vunpack.c.l.b16 %v1073
    %v1205 = vunpack.c.h.b16 %v1073
    %v1206 = vunpack.c.l.b16 %v1074
    %v1207 = vunpack.c.h.b16 %v1074
    %v1208 = vunpack.c.l.b16 %v1075
    %v1209 = vunpack.c.h.b16 %v1075
    %v1210 = vunpack.c.l.b16 %v1076
    %v1211 = vunpack.c.h.b16 %v1076
    %v1212 = vunpack.c.l.b16 %v1077
    %v1213 = vunpack.c.h.b16 %v1077
    %v1214 = vunpack.c.l.b16 %v1078
    %v1215 = vunpack.c.h.b16 %v1078
    %v1216 = vpack.c.b16 %v1192, %v1190
    %v1217 = vpack.c.b16 %v1193, %v1191
    %v1218 = vpack.c.b16 %v1196, %v1194
    %v1219 = vpack.c.b16 %v1197, %v1195
    %v1220 = vpack.c.b16 %v1200, %v1198
    %v1221 = vpack.c.b16 %v1201, %v1199
    %v1222 = vpack.c.b16 %v1204, %v1202
    %v1223 = vpack.c.b16 %v1205, %v1203
    %v1224 = vpack.c.b16 %v1208, %v1206
    %v1225 = vpack.c.b16 %v1209, %v1207
    %v1226 = vpack.c.b16 %v1212, %v1210
    %v1227 = vpack.c.b16 %v1213, %v1211
    %v1228 = vpack.c.b16 %v1214, %v1214
    %v1229 = vpack.c.b16 %v1215, %v1215
    %vm1237 = vcmask 719872
    %v1239 = vsel %vm1237, %v1217, 0
    %v1242 = vsel %vm1237, %v1219, 0
    %v1245 = vsel %vm1237, %v1221, 0
    %v1248 = vsel %vm1237, %v1223, 0
    %v1251 = vsel %vm1237, %v1225, 0
    %v1254 = vsel %vm1237, %v1227, 0
    %v1257 = vsel %vm1237, %v1229, 0
    %vm1259 = vcmask 1043456
    %v1261 = vsel %vm1259, %v1065, 0
    %1263 = vmatprep.subr.bf16.mxu0 0
    %1264 = vmatpush1.bf16.msra.mxu0 %v1052
    %1265 = vmatprep.subr.bf16.mxu0 0
    %1266 = vmatpush1.bf16.msra.mxu0 %v1053
    %1267 = vmatprep.subr.bf16.mxu0 0
    %1268 = vmatpush1.bf16.msra.mxu0 %v1054
    %1269 = vmatprep.subr.bf16.mxu0 0
    %1270 = vmatpush1.bf16.msra.mxu0 %v1055
    %1271 = vmatprep.subr.bf16.mxu0 0
    %1272 = vmatpush1.bf16.msra.mxu0 %v1056
    %1273 = vmatprep.subr.bf16.mxu0 0
    %1274 = vmatpush1.bf16.msra.mxu0 %v1057
    %1275 = vmatprep.subr.bf16.mxu0 0
    %1276 = vmatpush1.bf16.msra.mxu0 %v1058
    %1277 = vmatprep.subr.bf16.mxu0 0
    %1278 = vmatpush1.bf16.msra.mxu0 %v1059
    %1279 = vmatprep.subr.bf16.mxu0 0
    %1280 = vmatpush1.bf16.msra.mxu0 %v1060
    %1281 = vmatprep.subr.bf16.mxu0 0
    %1282 = vmatpush1.bf16.msra.mxu0 %v1061
    %1283 = vmatprep.subr.bf16.mxu0 0
    %1284 = vmatpush1.bf16.msra.mxu0 %v1062
    %1285 = vmatprep.subr.bf16.mxu0 0
    %1286 = vmatpush1.bf16.msra.mxu0 %v1063
    %1287 = vmatprep.subr.bf16.mxu0 0
    %1288 = vmatpush1.bf16.msra.mxu0 %v1064
    %1289 = vmatprep.subr.bf16.mxu0 0
    %1290 = vmatpush1.bf16.msra.mxu0 %v1261
    %1291 = vmatprep.subr.bf16.mxu0 0
    %1292 = vmatpush1.bf16.msra.mxu0 0
    %1293 = vmatprep.subr.bf16.mxu0 0
    %1294 = vmatpush1.bf16.msra.mxu0 0
    %1295 = vmatprep.mubr.bf16.mxu0 %v1239
    %1296 = vmatmul.mubr.bf16.gmra.mrb[0].mxu0 %v1216
    %v1297 = vpop.f32.mrb[0].mxu0
    %v1298 = vadd.f32 %v1164, %v1297
    %v1299 = vpop.f32.mrb[0].mxu0
    %v1300 = vpop.f32.mrb[0].mxu0
    %v1301 = vadd.f32 %v1165, %v1300
    %v1302 = vpop.f32.mrb[0].mxu0
    %1303 = vmatprep.mubr.bf16.mxu0 %v1242
    %1304 = vmatmul.mubr.bf16.gmra.mrb[0].mxu0 %v1218
    %v1305 = vpop.f32.mrb[0].mxu0
    %v1306 = vadd.f32 %v1166, %v1305
    %v1307 = vpop.f32.mrb[0].mxu0
    %v1308 = vpop.f32.mrb[0].mxu0
    %v1309 = vadd.f32 %v1167, %v1308
    %v1310 = vpop.f32.mrb[0].mxu0
    %1311 = vmatprep.mubr.bf16.mxu0 %v1245
    %1312 = vmatmul.mubr.bf16.gmra.mrb[0].mxu0 %v1220
    %v1313 = vpop.f32.mrb[0].mxu0
    %v1314 = vadd.f32 %v1168, %v1313
    %v1315 = vpop.f32.mrb[0].mxu0
    %v1316 = vpop.f32.mrb[0].mxu0
    %v1317 = vadd.f32 %v1169, %v1316
    %v1318 = vpop.f32.mrb[0].mxu0
    %1319 = vmatprep.mubr.bf16.mxu0 %v1248
    %1320 = vmatmul.mubr.bf16.gmra.mrb[0].mxu0 %v1222
    %v1321 = vpop.f32.mrb[0].mxu0
    %v1322 = vadd.f32 %v1170, %v1321
    %v1323 = vpop.f32.mrb[0].mxu0
    %v1324 = vpop.f32.mrb[0].mxu0
    %v1325 = vadd.f32 %v1171, %v1324
    %v1326 = vpop.f32.mrb[0].mxu0
    %1327 = vmatprep.mubr.bf16.mxu0 %v1251
    %1328 = vmatmul.mubr.bf16.gmra.mrb[0].mxu0 %v1224
    %v1329 = vpop.f32.mrb[0].mxu0
    %v1330 = vadd.f32 %v1172, %v1329
    %v1331 = vpop.f32.mrb[0].mxu0
    %v1332 = vpop.f32.mrb[0].mxu0
    %v1333 = vadd.f32 %v1173, %v1332
    %v1334 = vpop.f32.mrb[0].mxu0
    %1335 = vmatprep.mubr.bf16.mxu0 %v1254
    %1336 = vmatmul.mubr.bf16.gmra.mrb[0].mxu0 %v1226
    %v1337 = vpop.f32.mrb[0].mxu0
    %v1338 = vadd.f32 %v1174, %v1337
    %v1339 = vpop.f32.mrb[0].mxu0
    %v1340 = vpop.f32.mrb[0].mxu0
    %v1341 = vadd.f32 %v1175, %v1340
    %v1342 = vpop.f32.mrb[0].mxu0
    %1343 = vmatprep.mubr.bf16.mxu0 %v1257
    %1344 = vmatmul.mubr.bf16.gmra.mrb[0].mxu0 %v1228
    %v1345 = vpop.f32.mrb[0].mxu0
    %v1346 = vadd.f32 %v1176, %v1345
    %v1347 = vpop.f32.mrb[0].mxu0
    %v1348 = vpop.f32.mrb[0].mxu0
    %v1349 = vpop.f32.mrb[0].mxu0
    %1350 = vdwg.mxu0
    %v1351 = vld [vmem:[%s8] sm:$0xff]
    %v1352 = vld [vmem:[%s8 + $0x8] sm:$0xff]
    %v1353 = vld [vmem:[%s8 + $0x10] sm:$0xff]
    %v1354 = vld [vmem:[%s8 + $0x18] sm:$0xff]
    %v1355 = vld [vmem:[%s8 + $0x20] sm:$0xff]
    %v1356 = vld [vmem:[%s8 + $0x28] sm:$0xff]
    %v1357 = vld [vmem:[%s8 + $0x30] sm:$0xff]
    %v1358 = vld [vmem:[%s8 + $0x38] sm:$0xff]
    %v1359 = vld [vmem:[%s8 + $0x40] sm:$0xff]
    %v1360 = vld [vmem:[%s8 + $0x48] sm:$0xff]
    %v1361 = vld [vmem:[%s8 + $0x50] sm:$0xff]
    %v1362 = vld [vmem:[%s8 + $0x58] sm:$0xff]
    %v1363 = vld [vmem:[%s8 + $0x60] sm:$0xf]
    %1365 = vset.pattern.permute.xlu0 0
    %1366 = vperm.xlu0 %1365, %v1351
    %v1367 = vpop.permute.xlu0 %1366
    %1370 = vset.pattern.permute.xlu0 0
    %1371 = vperm.xlu0 %1370, %v1352
    %v1372 = vpop.permute.xlu0 %1371
    %1375 = vset.pattern.permute.xlu0 0
    %1376 = vperm.xlu0 %1375, %v1353
    %v1377 = vpop.permute.xlu0 %1376
    %1380 = vset.pattern.permute.xlu0 0
    %1381 = vperm.xlu0 %1380, %v1354
    %v1382 = vpop.permute.xlu0 %1381
    %1385 = vset.pattern.permute.xlu0 0
    %1386 = vperm.xlu0 %1385, %v1355
    %v1387 = vpop.permute.xlu0 %1386
    %1390 = vset.pattern.permute.xlu0 0
    %1391 = vperm.xlu0 %1390, %v1356
    %v1392 = vpop.permute.xlu0 %1391
    %1395 = vset.pattern.permute.xlu0 0
    %1396 = vperm.xlu0 %1395, %v1357
    %v1397 = vpop.permute.xlu0 %1396
    %1400 = vset.pattern.permute.xlu0 0
    %1401 = vperm.xlu0 %1400, %v1358
    %v1402 = vpop.permute.xlu0 %1401
    %1405 = vset.pattern.permute.xlu0 0
    %1406 = vperm.xlu0 %1405, %v1359
    %v1407 = vpop.permute.xlu0 %1406
    %1410 = vset.pattern.permute.xlu0 0
    %1411 = vperm.xlu0 %1410, %v1360
    %v1412 = vpop.permute.xlu0 %1411
    %1415 = vset.pattern.permute.xlu0 0
    %1416 = vperm.xlu0 %1415, %v1361
    %v1417 = vpop.permute.xlu0 %1416
    %1420 = vset.pattern.permute.xlu0 0
    %1421 = vperm.xlu0 %1420, %v1362
    %v1422 = vpop.permute.xlu0 %1421
    %1425 = vset.pattern.permute.xlu0 0
    %1426 = vperm.xlu0 %1425, %v1363
    %v1427 = vpop.permute.xlu0 %1426
    %v1429 = vadd.f32 %v1298, %v1367
    %v1430 = vadd.f32 %v1301, %v1372
    %v1431 = vadd.f32 %v1306, %v1377
    %v1432 = vadd.f32 %v1309, %v1382
    %v1433 = vadd.f32 %v1314, %v1387
    %v1434 = vadd.f32 %v1317, %v1392
    %v1435 = vadd.f32 %v1322, %v1397
    %v1436 = vadd.f32 %v1325, %v1402
    %v1437 = vadd.f32 %v1330, %v1407
    %v1438 = vadd.f32 %v1333, %v1412
    %v1439 = vadd.f32 %v1338, %v1417
    %v1440 = vadd.f32 %v1341, %v1422
    %v1441 = vadd.f32 %v1346, %v1427
    %v1442 = vmax.f32 %v1429, 0.0
    %v1443 = vmax.f32 %v1430, 0.0
    %v1444 = vmax.f32 %v1431, 0.0
    %v1445 = vmax.f32 %v1432, 0.0
    %v1446 = vmax.f32 %v1433, 0.0
    %v1447 = vmax.f32 %v1434, 0.0
    %v1448 = vmax.f32 %v1435, 0.0
    %v1449 = vmax.f32 %v1436, 0.0
    %v1450 = vmax.f32 %v1437, 0.0
    %v1451 = vmax.f32 %v1438, 0.0
    %v1452 = vmax.f32 %v1439, 0.0
    %v1453 = vmax.f32 %v1440, 0.0
    %v1454 = vmax.f32 %v1441, 0.0
    %v1455 = vpack.c.bf16 %v1443, %v1442
    %v1456 = vpack.c.bf16 %v1445, %v1444
    %v1457 = vpack.c.bf16 %v1447, %v1446
    %v1458 = vpack.c.bf16 %v1449, %v1448
    %v1459 = vpack.c.bf16 %v1451, %v1450
    %v1460 = vpack.c.bf16 %v1453, %v1452
    %v1461 = vpack.c.bf16 %v1454, %v1454
    %v1462 = vld [vmem:[%s9] sm:$0xf]
    %v1463 = vld [vmem:[%s9 + $0x4] sm:$0xf]
    %v1464 = vld [vmem:[%s9 + $0x8] sm:$0xf]
    %v1465 = vld [vmem:[%s9 + $0xc] sm:$0xf]
    %v1466 = vld [vmem:[%s9 + $0x10] sm:$0xf]
    %v1467 = vld [vmem:[%s10] sm:$0xff]
    %v1468 = vld [vmem:[%s10 + $0x8] sm:$0xff]
    %v1469 = vld [vmem:[%s10 + $0x10] sm:$0xff]
    %v1470 = vld [vmem:[%s10 + $0x18] sm:$0xff]
    %v1471 = vld [vmem:[%s10 + $0x20] sm:$0xff]
    %1473 = vset.pattern.permute.xlu0 0
    %1474 = vperm.xlu0 %1473, %v1467
    %v1475 = vpop.permute.xlu0 %1474
    %1478 = vset.pattern.permute.xlu0 0
    %1479 = vperm.xlu0 %1478, %v1468
    %v1480 = vpop.permute.xlu0 %1479
    %1483 = vset.pattern.permute.xlu0 0
    %1484 = vperm.xlu0 %1483, %v1469
    %v1485 = vpop.permute.xlu0 %1484
    %1488 = vset.pattern.permute.xlu0 0
    %1489 = vperm.xlu0 %1488, %v1470
    %v1490 = vpop.permute.xlu0 %1489
    %1493 = vset.pattern.permute.xlu0 0
    %1494 = vperm.xlu0 %1493, %v1471
    %v1495 = vpop.permute.xlu0 %1494
    %v1502 = vunpack.c.l.b16 %v1462
    %v1503 = vunpack.c.l.b16 %v1463
    %v1504 = vunpack.c.l.b16 %v1464
    %v1505 = vunpack.c.l.b16 %v1465
    %v1506 = vunpack.c.l.b16 %v1466
    %v1507 = vpack.c.b16 %v1503, %v1502
    %v1508 = vpack.c.b16 %v1505, %v1504
    %v1509 = vpack.c.b16 %v1506, %v1506
    %vm1510 = vcmask 818176
    %v1512 = vsel %vm1510, %v1507, 0
    %v1515 = vsel %vm1510, %v1508, 0
    %v1518 = vsel %vm1510, %v1509, 0
    %vm1520 = vcmask 1041408
    %v1522 = vsel %vm1520, %v1461, 0
    %1524 = vmatprep.subr.bf16.mxu0 0
    %1525 = vmatpush1.bf16.msra.mxu0 %v1455
    %1526 = vmatprep.subr.bf16.mxu0 0
    %1527 = vmatpush1.bf16.msra.mxu0 %v1456
    %1528 = vmatprep.subr.bf16.mxu0 0
    %1529 = vmatpush1.bf16.msra.mxu0 %v1457
    %1530 = vmatprep.subr.bf16.mxu0 0
    %1531 = vmatpush1.bf16.msra.mxu0 %v1458
    %1532 = vmatprep.subr.bf16.mxu0 0
    %1533 = vmatpush1.bf16.msra.mxu0 %v1459
    %1534 = vmatprep.subr.bf16.mxu0 0
    %1535 = vmatpush1.bf16.msra.mxu0 %v1460
    %1536 = vmatprep.subr.bf16.mxu0 0
    %1537 = vmatpush1.bf16.msra.mxu0 %v1522
    %1538 = vmatprep.subr.bf16.mxu0 0
    %1539 = vmatpush1.bf16.msra.mxu0 0
    %1540 = vmatprep.subr.bf16.mxu0 0
    %1541 = vmatpush1.bf16.msra.mxu0 0
    %1542 = vmatprep.subr.bf16.mxu0 0
    %1543 = vmatpush1.bf16.msra.mxu0 0
    %1544 = vmatprep.subr.bf16.mxu0 0
    %1545 = vmatpush1.bf16.msra.mxu0 0
    %1546 = vmatprep.subr.bf16.mxu0 0
    %1547 = vmatpush1.bf16.msra.mxu0 0
    %1548 = vmatprep.subr.bf16.mxu0 0
    %1549 = vmatpush1.bf16.msra.mxu0 0
    %1550 = vmatprep.subr.bf16.mxu0 0
    %1551 = vmatpush1.bf16.msra.mxu0 0
    %1552 = vmatprep.subr.bf16.mxu0 0
    %1553 = vmatpush1.bf16.msra.mxu0 0
    %1554 = vmatprep.subr.bf16.mxu0 0
    %1555 = vmatpush1.bf16.msra.mxu0 0
    %1556 = vmatprep.mubr.bf16.mxu0 0
    %1557 = vmatmul.mubr.bf16.gmra.mrb[0].mxu0 %v1512
    %v1558 = vpop.f32.mrb[0].mxu0
    %v1559 = vadd.f32 %v1475, %v1558
    %v1560 = vpop.f32.mrb[0].mxu0
    %v1561 = vpop.f32.mrb[0].mxu0
    %v1562 = vadd.f32 %v1480, %v1561
    %v1563 = vpop.f32.mrb[0].mxu0
    %1564 = vmatprep.mubr.bf16.mxu0 0
    %1565 = vmatmul.mubr.bf16.gmra.mrb[0].mxu0 %v1515
    %v1566 = vpop.f32.mrb[0].mxu0
    %v1567 = vadd.f32 %v1485, %v1566
    %v1568 = vpop.f32.mrb[0].mxu0
    %v1569 = vpop.f32.mrb[0].mxu0
    %v1570 = vadd.f32 %v1490, %v1569
    %v1571 = vpop.f32.mrb[0].mxu0
    %1572 = vmatprep.mubr.bf16.mxu0 0
    %1573 = vmatmul.mubr.bf16.gmra.mrb[0].mxu0 %v1518
    %v1574 = vpop.f32.mrb[0].mxu0
    %v1575 = vadd.f32 %v1495, %v1574
    %v1576 = vpop.f32.mrb[0].mxu0
    %v1577 = vpop.f32.mrb[0].mxu0
    %v1578 = vpop.f32.mrb[0].mxu0
    %1579 = vdwg.mxu0
    %v1580 = vmax.f32 %v1559, 0.0
    %v1581 = vmax.f32 %v1562, 0.0
    %v1582 = vmax.f32 %v1567, 0.0
    %v1583 = vmax.f32 %v1570, 0.0
    %v1584 = vmax.f32 %v1575, 0.0
    %v1585 = vpack.c.bf16 %v1581, %v1580
    %v1586 = vpack.c.bf16 %v1583, %v1582
    %v1587 = vpack.c.bf16 %v1584, %v1584
    %v1588 = vld [vmem:[%s11] sm:$0x1]
    %v1589 = vld [vmem:[#allocation2] sm:$0x1]
    %1591 = vset.pattern.permute.xlu0 0
    %1592 = vperm.xlu0 %1591, %v1589
    %v1593 = vpop.permute.xlu0 %1592
    %v1595 = vlaneseq
    %v1596 = vshrl.u32 %v1595, 7
    %v1597 = vsub.s32 0, %v1596
    %v1598 = vrot.slane %v1593, %v1597
    %vm1599 = vcmask 326656
    %v1601 = vsel %vm1599, %v1588, 0
    %v1604 = vsel %vm1259, %v1587, 0
    %1606 = vmatprep.subr.bf16.mxu0 0
    %1607 = vmatpush1.bf16.msra.mxu0 %v1585
    %1608 = vmatprep.subr.bf16.mxu0 0
    %1609 = vmatpush1.bf16.msra.mxu0 %v1586
    %1610 = vmatprep.subr.bf16.mxu0 0
    %1611 = vmatpush1.bf16.msra.mxu0 %v1604
    %1612 = vmatprep.subr.bf16.mxu0 0
    %1613 = vmatpush1.bf16.msra.mxu0 0
    %1614 = vmatprep.subr.bf16.mxu0 0
    %1615 = vmatpush1.bf16.msra.mxu0 0
    %1616 = vmatprep.subr.bf16.mxu0 0
    %1617 = vmatpush1.bf16.msra.mxu0 0
    %1618 = vmatprep.subr.bf16.mxu0 0
    %1619 = vmatpush1.bf16.msra.mxu0 0
    %1620 = vmatprep.subr.bf16.mxu0 0
    %1621 = vmatpush1.bf16.msra.mxu0 0
    %1622 = vmatprep.subr.bf16.mxu0 0
    %1623 = vmatpush1.bf16.msra.mxu0 0
    %1624 = vmatprep.subr.bf16.mxu0 0
    %1625 = vmatpush1.bf16.msra.mxu0 0
    %1626 = vmatprep.subr.bf16.mxu0 0
    %1627 = vmatpush1.bf16.msra.mxu0 0
    %1628 = vmatprep.subr.bf16.mxu0 0
    %1629 = vmatpush1.bf16.msra.mxu0 0
    %1630 = vmatprep.subr.bf16.mxu0 0
    %1631 = vmatpush1.bf16.msra.mxu0 0
    %1632 = vmatprep.subr.bf16.mxu0 0
    %1633 = vmatpush1.bf16.msra.mxu0 0
    %1634 = vmatprep.subr.bf16.mxu0 0
    %1635 = vmatpush1.bf16.msra.mxu0 0
    %1636 = vmatprep.subr.bf16.mxu0 0
    %1637 = vmatpush1.bf16.msra.mxu0 0
    %1638 = vmatprep.mubr.bf16.mxu0 0
    %1639 = vmatmul.mubr.bf16.gmra.mrb[0].mxu0 %v1601
    %v1640 = vpop.f32.mrb[0].mxu0
    %v1641 = vadd.f32 %v1598, %v1640
    %v1642 = vpop.f32.mrb[0].mxu0
    %v1643 = vpop.f32.mrb[0].mxu0
    %v1644 = vpop.f32.mrb[0].mxu0
    %1645 = vdwg.mxu0
    %1646 = vst [vmem:[#allocation3] sm:$0x1] %v1641
    // Predicated region
    $region54: #{tpu_custom_call.1} parent=1 // pred_check
      _
    $region55: #{tpu_custom_call.1} parent=1 // pred_check_branch
      %1648 = sbr.rel (0) target = $region57
    $region56: #{tpu_custom_call.1} parent=1 // pred_region
      %s1650 = ssub.s32 16, 16
      %1651 = vsyncadd [#allocation4], %s1650
      %s1653 = sshll.u32 [#allocation3], 4
      %s1654 = int_to_ptr.vmem [resolvable:$true] %s1653
      %1656 = dma.vmem_to_hbm [thread:$0]  %s1654, 16, %s13, [#allocation4]
    $region57: #{tpu_custom_call.1} parent=1 // pred_fallthru
      _
    // Predicated region
    $region58: #{tpu_custom_call.1} parent=1 // pred_check
      _
    $region59: #{tpu_custom_call.1} parent=1 // pred_check_branch
      %1658 = sbr.rel (0) target = $region61
    $region60: #{tpu_custom_call.1} parent=1 // pred_region
      %1659 = dma.done [#allocation4], 16
    $region61: #{tpu_custom_call.1} parent=1 // pred_fallthru
      _
    %1660 = vsyncpa [#allocation4], 1

</llo_original>
